<compile_context>
chip_gen: v7x
topology: tpu7x:2x2x1
jax: 0.10.0
libtpu: 0.0.40
codegen_flags: <defaults>
</compile_context>

<pallas_src>
import jax
import jax.numpy as jnp
from jax.experimental import pallas as pl
from jax.experimental.pallas import tpu as pltpu


def _round_up(x, m):
    return ((x + m - 1) // m) * m


def _vmem_limit(block_bytes, scratch_bytes=0):
    # explicit scoped-VMEM budget: double-buffered blocks + scratch + headroom
    total = 2 * block_bytes + scratch_bytes
    return int(min(max(2 * total, 4 << 20), 64 << 20))


# ---------------- Pallas kernel 1: per-pixel _P2S MLP -> mixing weights (bf16) ----------------
def _mlp_kernel(z_ref, w1_ref, b1_ref, w2_ref, b2_ref, w3_ref, b3_ref,
                w4_ref, b4_ref, o_ref):
    zb = z_ref[0].astype(jnp.bfloat16)                                               # (33, tm)
    h = jnp.dot(w1_ref[...], zb, preferred_element_type=jnp.float32) + b1_ref[...]   # (128, tm)
    h = jnp.maximum(h, 0.0).astype(jnp.bfloat16)
    h = jnp.dot(w2_ref[...], h, preferred_element_type=jnp.float32) + b2_ref[...]
    h = jnp.maximum(h, 0.0).astype(jnp.bfloat16)
    h = jnp.dot(w3_ref[...], h, preferred_element_type=jnp.float32) + b3_ref[...]
    h = jnp.maximum(h, 0.0).astype(jnp.bfloat16)
    # per-pixel mixing weights, channel-major; row 100 == 1.0 (folded "mu" channel),
    # rows 101..127 == 0.  Stored bf16 so the downstream dictionary contraction is bf16.
    w = jnp.dot(w4_ref[...], h, preferred_element_type=jnp.float32) + b4_ref[...]    # (128, tm)
    o_ref[0] = w.astype(jnp.bfloat16)


def prepare_p2s_params(mlp_params, n_basis=100, hid=128, kp=128):
    """Pad/transpose the _P2S weights for the feature-major MXU MLP kernel."""
    w1, b1, w2, b2, w3, b3, w4, b4 = mlp_params            # w: (in, out) f32, b: (1, out) f32

    def pad_t(w, rows, cols, dtype):
        wp = jnp.zeros((rows, cols), jnp.float32).at[:w.shape[0], :w.shape[1]].set(w)
        return wp.T.astype(dtype)                          # -> (out_features, in_features)

    def pad_b(b, n):
        return jnp.zeros((n, 1), jnp.float32).at[:b.shape[1], 0].set(b[0])

    w1t = pad_t(w1, w1.shape[0], hid, jnp.bfloat16)        # (128, 33)
    w2t = pad_t(w2, hid, hid, jnp.bfloat16)                # (128, 128)
    w3t = pad_t(w3, hid, hid, jnp.bfloat16)
    w4t = pad_t(w4, hid, kp, jnp.bfloat16)                 # (128, 128)
    b1t, b2t, b3t = pad_b(b1, hid), pad_b(b2, hid), pad_b(b3, hid)
    # channel n_basis (== 100) is the constant-1 "mu" channel -> fold into the bias.
    b4t = pad_b(b4, kp).at[n_basis, 0].set(1.0)
    return (w1t, b1t, w2t, b2t, w3t, b3t, w4t, b4t)


def p2s_mix_weights(z_flat, params, tm):
    """z_flat: (B, 33, Lf) f32 -> mixing weights (B, 128, Lf) bf16 (row 100 == 1)."""
    w1t, b1t, w2t, b2t, w3t, b3t, w4t, b4t = params
    B, in_dim, Lf = z_flat.shape
    kp = w4t.shape[0]
    assert Lf % tm == 0

    def wmap(b, t):
        return (0, 0)

    weight_bytes = sum(int(a.size) * a.dtype.itemsize for a in params)
    block_bytes = in_dim * tm * 4 + kp * tm * 2 + weight_bytes

    return pl.pallas_call(
        _mlp_kernel,
        out_shape=jax.ShapeDtypeStruct((B, kp, Lf), jnp.bfloat16),
        grid_spec=pltpu.PrefetchScalarGridSpec(
            num_scalar_prefetch=0,
            grid=(B, Lf // tm),
            in_specs=[
                pl.BlockSpec((1, in_dim, tm), lambda b, t: (b, 0, t)),
                pl.BlockSpec(w1t.shape, wmap), pl.BlockSpec(b1t.shape, wmap),
                pl.BlockSpec(w2t.shape, wmap), pl.BlockSpec(b2t.shape, wmap),
                pl.BlockSpec(w3t.shape, wmap), pl.BlockSpec(b3t.shape, wmap),
                pl.BlockSpec(w4t.shape, wmap), pl.BlockSpec(b4t.shape, wmap),
            ],
            out_specs=pl.BlockSpec((1, kp, tm), lambda b, t: (b, 0, t)),
        ),
        compiler_params=pltpu.CompilerParams(
            dimension_semantics=("parallel", "parallel"),
            vmem_limit_bytes=_vmem_limit(block_bytes)),
    )(z_flat, w1t, b1t, w2t, b2t, w3t, b3t, w4t, b4t)


# ------- Pallas kernel 2: fused dictionary contraction + shift-accumulate blur + divide -------
def prepare_dict(wconv, kp=128):
    """(K, ks, ks) PSF dictionary -> (ks, ksp, 128) bf16 with wc[i, j, k] = wconv[k, i, j]."""
    K, ks, _ = wconv.shape
    ksp = _round_up(ks, 8)
    wc = jnp.zeros((ks, ksp, kp), jnp.float32)
    wc = wc.at[:, :ks, :K].set(jnp.transpose(wconv, (1, 2, 0)))
    return wc.astype(jnp.bfloat16)


def _make_fused_blur_kernel(ks, Wp, Lout):
    # Flat-offset trick: with row-major flattening at padded width Wp, the window of tap
    # (i, j) for every output pixel is the contiguous slice [d, d + Lout), d = i*Wp + j.
    # Columns x >= W of the accumulator collect junk and are sliced away by the wrapper.
    #
    # TODO(synk): production ks=67 / megapixel frames need (a) spatial tiling with a halo
    # (manual DMA of overlapping flat chunks) so the planes are not fully VMEM-resident and
    # both v7x TensorCores get work at B=1, and (b) lax.fori_loop over taps; at demo scale
    # the static unroll keeps every slice offset static, the most robust lowering path.
    def kernel(base_ref, wmix_ref, wc_ref, out_ref, g_ref, acc_n_ref, acc_d_ref):
        acc_n_ref[...] = jnp.zeros_like(acc_n_ref)
        acc_d_ref[...] = jnp.zeros_like(acc_d_ref)
        wmix = wmix_ref[0]                                                    # (128, Lf) bf16
        for i in range(ks):
            # all taps of kernel row i, all padded pixels, on the MXU (bf16 -> f32):
            #   g[j, q] = sum_k wconv[k, i, j] * weight[q, k]
            g_ref[...] = jnp.dot(wc_ref[i], wmix, preferred_element_type=jnp.float32)
            for j in range(ks):
                d = i * Wp + j
                gs = g_ref[j:j + 1, d:d + Lout]                               # (1, Lout)
                bs = base_ref[0, :, d:d + Lout]                               # (3, Lout)
                acc_n_ref[...] = acc_n_ref[...] + bs * gs
                acc_d_ref[...] = acc_d_ref[...] + gs       # ones channel: add only, no multiply
        # fused numerator / denominator division (EUP reciprocal), store 3 channels only
        out_ref[0] = acc_n_ref[...] * pl.reciprocal(acc_d_ref[...], approx=True)
    return kernel


def fused_dict_blur(base_flat, wmix_flat, wc, *, H, W, ks, Wp):
    B, C3, Lf = base_flat.shape
    KP = wmix_flat.shape[1]
    ksp = wc.shape[1]
    Lout = H * Wp
    kernel = _make_fused_blur_kernel(ks, Wp, Lout)

    block_bytes = C3 * Lf * 4 + KP * Lf * 2 + int(wc.size) * 2 + 3 * Lout * 4
    scratch_bytes = ksp * Lf * 4 + 4 * Lout * 4

    return pl.pallas_call(
        kernel,
        out_shape=jax.ShapeDtypeStruct((B, 3, Lout), jnp.float32),
        grid_spec=pltpu.PrefetchScalarGridSpec(
            num_scalar_prefetch=0,
            grid=(B,),
            in_specs=[
                pl.BlockSpec((1, C3, Lf), lambda b: (b, 0, 0)),
                pl.BlockSpec((1, KP, Lf), lambda b: (b, 0, 0)),
                pl.BlockSpec(wc.shape, lambda b: (0, 0, 0)),
            ],
            out_specs=pl.BlockSpec((1, 3, Lout), lambda b: (b, 0, 0)),
            scratch_shapes=[
                pltpu.VMEM((ksp, Lf), jnp.float32),      # G for one kernel row
                pltpu.VMEM((3, Lout), jnp.float32),      # numerator accumulator
                pltpu.VMEM((1, Lout), jnp.float32),      # denominator accumulator
            ],
        ),
        compiler_params=pltpu.CompilerParams(
            dimension_semantics=("parallel",),
            vmem_limit_bytes=_vmem_limit(block_bytes, scratch_bytes)),
    )(base_flat, wmix_flat, wc)


# ------------------------------ JAX glue -------------------------------------
# TODO(synk): F.grid_sample (data-dependent bilinear gather) stays in plain JAX;
# it has no clean rectangular-BlockSpec Pallas equivalent here.
def grid_sample_bilinear_border(img, flow):
    """PyTorch F.grid_sample(img, flow, 'bilinear', padding_mode='border', align_corners=False)."""
    B, C, H, W = img.shape
    x = flow[..., 0]
    y = flow[..., 1]
    ix = ((x + 1.0) * W - 1.0) * 0.5
    iy = ((y + 1.0) * H - 1.0) * 0.5
    ix = jnp.clip(ix, 0.0, W - 1.0)          # border padding
    iy = jnp.clip(iy, 0.0, H - 1.0)
    ix0 = jnp.floor(ix)
    iy0 = jnp.floor(iy)
    wx1 = ix - ix0
    wy1 = iy - iy0
    wx0 = 1.0 - wx1
    wy0 = 1.0 - wy1
    ix0i = jnp.clip(ix0.astype(jnp.int32), 0, W - 1)
    iy0i = jnp.clip(iy0.astype(jnp.int32), 0, H - 1)
    ix1i = jnp.clip(ix0.astype(jnp.int32) + 1, 0, W - 1)
    iy1i = jnp.clip(iy0.astype(jnp.int32) + 1, 0, H - 1)

    flat = img.reshape(B, C, H * W)

    def gather(iyi, ixi):
        idx = (iyi * W + ixi).reshape(B, 1, H * W)
        idx = jnp.broadcast_to(idx, (B, C, H * W))
        return jnp.take_along_axis(flat, idx, axis=2).reshape(B, C, H, W)

    v00 = gather(iy0i, ix0i)
    v01 = gather(iy0i, ix1i)
    v10 = gather(iy1i, ix0i)
    v11 = gather(iy1i, ix1i)
    wx0 = wx0[:, None]; wx1 = wx1[:, None]
    wy0 = wy0[:, None]; wy1 = wy1[:, None]
    return wy0 * (wx0 * v00 + wx1 * v01) + wy1 * (wx0 * v10 + wx1 * v11)


def simulator_forward(img, zernike, mlp_params, wconv, *, tm=512):
    """Simulator.forward. img: (B, 3, H, W); zernike: (B, H, W, 35)."""
    B, C, H, W = img.shape
    K, ks, _ = wconv.shape
    pad = (ks - 1) // 2
    Hp, Wp = H + 2 * pad, W + 2 * pad

    # pixel grid + flow: matches the PyTorch module exactly (normalization uses (W-1, H-1)
    # while grid_sample denormalizes with align_corners=False, same mixed convention).
    yy, xx = jnp.meshgrid(jnp.arange(H), jnp.arange(W), indexing="ij")
    grid = jnp.stack((xx, yy), -1)[None].astype(jnp.float32)            # (1, H, W, 2)
    pos = zernike[..., :2]
    wh = jnp.array([W, H], dtype=jnp.float32)
    flow = 2.0 * (grid + pos) / (wh - 1.0) - 1.0
    tilt_img = grid_sample_bilinear_border(img, flow)                   # (B, 3, H, W)

    # reflect 'same' padding + row-major flatten at padded width Wp, plus a small zero tail
    # so the farthest tap window (offset 2*pad*(Wp+1)) stays in-bounds.  Reflect padding
    # commutes with the per-pixel MLP, so the MLP runs on the padded zernike field directly.
    base_p = jnp.pad(tilt_img, ((0, 0), (0, 0), (pad, pad), (pad, pad)), mode="reflect")
    zc = jnp.transpose(zernike[..., 2:], (0, 3, 1, 2))                  # (B, 33, H, W)
    zc_p = jnp.pad(zc, ((0, 0), (0, 0), (pad, pad), (pad, pad)), mode="reflect")

    tm = min(tm, _round_up(Hp * Wp + 2 * pad, 128))
    Lf = _round_up(Hp * Wp + 2 * pad, tm)

    def flat(x):
        x = x.reshape(x.shape[0], x.shape[1], Hp * Wp)
        return jnp.pad(x, ((0, 0), (0, 0), (0, Lf - Hp * Wp)))

    base_flat = flat(base_p)                                            # (B, 3, Lf) f32
    z_flat = flat(zc_p)                                                 # (B, 33, Lf) f32

    # Pallas kernel 1: per-pixel MLP -> 101(->128)-channel mixing weights (bf16, in HBM;
    # ~35x smaller than the old ks^2-channel G tensor).
    params = prepare_p2s_params(mlp_params, n_basis=K - 1)
    wmix_flat = p2s_mix_weights(z_flat, params, tm)                     # (B, 128, Lf) bf16

    # Pallas kernel 2: per-tap-row MXU contraction against the PSF dictionary + VPU
    # shift-accumulate + fused division.  G never touches HBM.
    wc = prepare_dict(wconv)                                            # (ks, ksp, 128) bf16
    out_flat = fused_dict_blur(base_flat, wmix_flat, wc, H=H, W=W, ks=ks, Wp=Wp)
    return out_flat.reshape(B, 3, H, Wp)[..., :W]


# ------------------------------ main -----------------------------------------
if __name__ == "__main__":
    B, C, H, W = 2, 3, 16, 16
    ks = 9  # module uses 67; scaled down for the small synthetic demo (reflect pad needs pad < H)

    key = jax.random.PRNGKey(0)
    keys = jax.random.split(key, 12)

    def linear_init(kw, kb, fan_in, fan_out):
        bound = 1.0 / (fan_in ** 0.5)
        w = jax.random.uniform(kw, (fan_in, fan_out), jnp.float32, -bound, bound)
        b = jax.random.uniform(kb, (1, fan_out), jnp.float32, -bound, bound)
        return w, b

    w1, b1 = linear_init(keys[0], keys[1], 33, 100)
    w2, b2 = linear_init(keys[2], keys[3], 100, 100)
    w3, b3 = linear_init(keys[4], keys[5], 100, 100)
    w4, b4 = linear_init(keys[6], keys[7], 100, 100)
    mlp_params = (w1, b1, w2, b2, w3, b3, w4, b4)

    # synthetic PSF dictionary: 100 basis PSFs + 1 mean PSF, each non-negative, sum=1
    raw = jax.random.uniform(keys[8], (101, ks, ks), jnp.float32, 0.0, 1.0)
    wconv = raw / jnp.sum(raw, axis=(-2, -1), keepdims=True)

    img = jax.random.uniform(keys[9], (B, C, H, W), jnp.float32)
    pos = jax.random.uniform(keys[10], (B, H, W, 2), jnp.float32, -2.0, 2.0)
    coeffs = 0.1 * jax.random.normal(keys[11], (B, H, W, 33), jnp.float32)
    zernike = jnp.concatenate([pos, coeffs], axis=-1)   # (B, H, W, 35)

    out = simulator_forward(img, zernike, mlp_params, wconv)
    out = jax.block_until_ready(out)
    assert out.shape == (B, 3, H, W) and out.dtype == jnp.float32
    print("KERNEL_OK")
</pallas_src>

<mosaic_0001>
module attributes {stable_mosaic.version = 11 : i64} {
  func.func @_mlp_kernel(%arg0: i32, %arg1: i32, %arg2: memref<1x33x512xf32, #tpu.memory_space<vmem>>, %arg3: memref<128x33xbf16, #tpu.memory_space<vmem>>, %arg4: memref<128x1xf32, #tpu.memory_space<vmem>>, %arg5: memref<128x128xbf16, #tpu.memory_space<vmem>>, %arg6: memref<128x1xf32, #tpu.memory_space<vmem>>, %arg7: memref<128x128xbf16, #tpu.memory_space<vmem>>, %arg8: memref<128x1xf32, #tpu.memory_space<vmem>>, %arg9: memref<128x128xbf16, #tpu.memory_space<vmem>>, %arg10: memref<128x1xf32, #tpu.memory_space<vmem>>, %arg11: memref<1x128x512xbf16, #tpu.memory_space<vmem>>) attributes {dimension_semantics = [#tpu.dimension_semantics<parallel>, #tpu.dimension_semantics<parallel>], iteration_bounds = array<i64: 2, 2>, scalar_prefetch = 0 : i64, scratch_operands = 0 : i64, tpu.core_type = #tpu.core_type<tc>, window_params = [{transform_indices = @transform_0, window_bounds = array<i64: 1, 33, 512>}, {pipeline_mode = #tpu.pipeline_mode<synchronous>, transform_indices = @transform_1, window_bounds = array<i64: 128, 33>}, {pipeline_mode = #tpu.pipeline_mode<synchronous>, transform_indices = @transform_2, window_bounds = array<i64: 128, 1>}, {pipeline_mode = #tpu.pipeline_mode<synchronous>, transform_indices = @transform_3, window_bounds = array<i64: 128, 128>}, {pipeline_mode = #tpu.pipeline_mode<synchronous>, transform_indices = @transform_4, window_bounds = array<i64: 128, 1>}, {pipeline_mode = #tpu.pipeline_mode<synchronous>, transform_indices = @transform_5, window_bounds = array<i64: 128, 128>}, {pipeline_mode = #tpu.pipeline_mode<synchronous>, transform_indices = @transform_6, window_bounds = array<i64: 128, 1>}, {pipeline_mode = #tpu.pipeline_mode<synchronous>, transform_indices = @transform_7, window_bounds = array<i64: 128, 128>}, {pipeline_mode = #tpu.pipeline_mode<synchronous>, transform_indices = @transform_8, window_bounds = array<i64: 128, 1>}, {transform_indices = @transform_9, window_bounds = array<i64: 1, 128, 512>}]} {
    %c0 = arith.constant 0 : index
    %c0_0 = arith.constant 0 : index
    %c0_1 = arith.constant 0 : index
    %0 = vector.load %arg2[%c0, %c0_0, %c0_1] : memref<1x33x512xf32, #tpu.memory_space<vmem>>, vector<1x33x512xf32>
    %1 = vector.shape_cast %0 : vector<1x33x512xf32> to vector<33x512xf32>
    %2 = arith.truncf %1 : vector<33x512xf32> to vector<33x512xbf16>
    %c0_2 = arith.constant 0 : index
    %c0_3 = arith.constant 0 : index
    %3 = vector.load %arg3[%c0_2, %c0_3] : memref<128x33xbf16, #tpu.memory_space<vmem>>, vector<128x33xbf16>
    %cst = arith.constant dense<0.000000e+00> : vector<128x512xf32>
    %4 = tpu.matmul %3, %2, %cst {dimension_numbers = #tpu.dot_dimension_numbers<[1], [0], [0], [1], [0, 0, 1, 1], [], []>} : vector<128x33xbf16>, vector<33x512xbf16>, vector<128x512xf32> -> vector<128x512xf32>
    %c0_4 = arith.constant 0 : index
    %c0_5 = arith.constant 0 : index
    %5 = vector.load %arg4[%c0_4, %c0_5] : memref<128x1xf32, #tpu.memory_space<vmem>>, vector<128x1xf32>
    %6 = vector.broadcast %5 : vector<128x1xf32> to vector<128x512xf32>
    %7 = arith.addf %4, %6 : vector<128x512xf32>
    %cst_6 = arith.constant 0.000000e+00 : f32
    %8 = vector.broadcast %cst_6 : f32 to vector<128x512xf32>
    %9 = arith.maximumf %7, %8 : vector<128x512xf32>
    %10 = arith.truncf %9 : vector<128x512xf32> to vector<128x512xbf16>
    %c0_7 = arith.constant 0 : index
    %c0_8 = arith.constant 0 : index
    %11 = vector.load %arg5[%c0_7, %c0_8] : memref<128x128xbf16, #tpu.memory_space<vmem>>, vector<128x128xbf16>
    %cst_9 = arith.constant dense<0.000000e+00> : vector<128x512xf32>
    %12 = tpu.matmul %11, %10, %cst_9 {dimension_numbers = #tpu.dot_dimension_numbers<[1], [0], [0], [1], [0, 0, 1, 1], [], []>} : vector<128x128xbf16>, vector<128x512xbf16>, vector<128x512xf32> -> vector<128x512xf32>
    %c0_10 = arith.constant 0 : index
    %c0_11 = arith.constant 0 : index
    %13 = vector.load %arg6[%c0_10, %c0_11] : memref<128x1xf32, #tpu.memory_space<vmem>>, vector<128x1xf32>
    %14 = vector.broadcast %13 : vector<128x1xf32> to vector<128x512xf32>
    %15 = arith.addf %12, %14 : vector<128x512xf32>
    %cst_12 = arith.constant 0.000000e+00 : f32
    %16 = vector.broadcast %cst_12 : f32 to vector<128x512xf32>
    %17 = arith.maximumf %15, %16 : vector<128x512xf32>
    %18 = arith.truncf %17 : vector<128x512xf32> to vector<128x512xbf16>
    %c0_13 = arith.constant 0 : index
    %c0_14 = arith.constant 0 : index
    %19 = vector.load %arg7[%c0_13, %c0_14] : memref<128x128xbf16, #tpu.memory_space<vmem>>, vector<128x128xbf16>
    %cst_15 = arith.constant dense<0.000000e+00> : vector<128x512xf32>
    %20 = tpu.matmul %19, %18, %cst_15 {dimension_numbers = #tpu.dot_dimension_numbers<[1], [0], [0], [1], [0, 0, 1, 1], [], []>} : vector<128x128xbf16>, vector<128x512xbf16>, vector<128x512xf32> -> vector<128x512xf32>
    %c0_16 = arith.constant 0 : index
    %c0_17 = arith.constant 0 : index
    %21 = vector.load %arg8[%c0_16, %c0_17] : memref<128x1xf32, #tpu.memory_space<vmem>>, vector<128x1xf32>
    %22 = vector.broadcast %21 : vector<128x1xf32> to vector<128x512xf32>
    %23 = arith.addf %20, %22 : vector<128x512xf32>
    %cst_18 = arith.constant 0.000000e+00 : f32
    %24 = vector.broadcast %cst_18 : f32 to vector<128x512xf32>
    %25 = arith.maximumf %23, %24 : vector<128x512xf32>
    %26 = arith.truncf %25 : vector<128x512xf32> to vector<128x512xbf16>
    %c0_19 = arith.constant 0 : index
    %c0_20 = arith.constant 0 : index
    %27 = vector.load %arg9[%c0_19, %c0_20] : memref<128x128xbf16, #tpu.memory_space<vmem>>, vector<128x128xbf16>
    %cst_21 = arith.constant dense<0.000000e+00> : vector<128x512xf32>
    %28 = tpu.matmul %27, %26, %cst_21 {dimension_numbers = #tpu.dot_dimension_numbers<[1], [0], [0], [1], [0, 0, 1, 1], [], []>} : vector<128x128xbf16>, vector<128x512xbf16>, vector<128x512xf32> -> vector<128x512xf32>
    %c0_22 = arith.constant 0 : index
    %c0_23 = arith.constant 0 : index
    %29 = vector.load %arg10[%c0_22, %c0_23] : memref<128x1xf32, #tpu.memory_space<vmem>>, vector<128x1xf32>
    %30 = vector.broadcast %29 : vector<128x1xf32> to vector<128x512xf32>
    %31 = arith.addf %28, %30 : vector<128x512xf32>
    %32 = arith.truncf %31 : vector<128x512xf32> to vector<128x512xbf16>
    %c0_24 = arith.constant 0 : index
    %c0_25 = arith.constant 0 : index
    %c0_26 = arith.constant 0 : index
    %33 = vector.load %arg11[%c0_24, %c0_25, %c0_26] : memref<1x128x512xbf16, #tpu.memory_space<vmem>>, vector<1x128x512xbf16>
    %34 = vector.shape_cast %33 : vector<1x128x512xbf16> to vector<128x512xbf16>
    %35 = vector.shape_cast %32 : vector<128x512xbf16> to vector<1x128x512xbf16>
    tpu.vector_store %arg11[%c0_24, %c0_25, %c0_26], %35 {strides = array<i32>} : memref<1x128x512xbf16, #tpu.memory_space<vmem>>, vector<1x128x512xbf16>,
    return
  }
  func.func @transform_0(%arg0: i32, %arg1: i32) -> (i32, i32, i32) {
    %c0_i32 = arith.constant 0 : i32
    %c0_i32_0 = arith.constant 0 : i32
    return %arg0, %c0_i32, %arg1 : i32, i32, i32
  }
  func.func @transform_1(%arg0: i32, %arg1: i32) -> (i32, i32) {
    %c0_i32 = arith.constant 0 : i32
    %c0_i32_0 = arith.constant 0 : i32
    %c0_i32_1 = arith.constant 0 : i32
    return %c0_i32, %c0_i32_0 : i32, i32
  }
  func.func @transform_2(%arg0: i32, %arg1: i32) -> (i32, i32) {
    %c0_i32 = arith.constant 0 : i32
    %c0_i32_0 = arith.constant 0 : i32
    %c0_i32_1 = arith.constant 0 : i32
    return %c0_i32, %c0_i32_0 : i32, i32
  }
  func.func @transform_3(%arg0: i32, %arg1: i32) -> (i32, i32) {
    %c0_i32 = arith.constant 0 : i32
    %c0_i32_0 = arith.constant 0 : i32
    %c0_i32_1 = arith.constant 0 : i32
    return %c0_i32, %c0_i32_0 : i32, i32
  }
  func.func @transform_4(%arg0: i32, %arg1: i32) -> (i32, i32) {
    %c0_i32 = arith.constant 0 : i32
    %c0_i32_0 = arith.constant 0 : i32
    %c0_i32_1 = arith.constant 0 : i32
    return %c0_i32, %c0_i32_0 : i32, i32
  }
  func.func @transform_5(%arg0: i32, %arg1: i32) -> (i32, i32) {
    %c0_i32 = arith.constant 0 : i32
    %c0_i32_0 = arith.constant 0 : i32
    %c0_i32_1 = arith.constant 0 : i32
    return %c0_i32, %c0_i32_0 : i32, i32
  }
  func.func @transform_6(%arg0: i32, %arg1: i32) -> (i32, i32) {
    %c0_i32 = arith.constant 0 : i32
    %c0_i32_0 = arith.constant 0 : i32
    %c0_i32_1 = arith.constant 0 : i32
    return %c0_i32, %c0_i32_0 : i32, i32
  }
  func.func @transform_7(%arg0: i32, %arg1: i32) -> (i32, i32) {
    %c0_i32 = arith.constant 0 : i32
    %c0_i32_0 = arith.constant 0 : i32
    %c0_i32_1 = arith.constant 0 : i32
    return %c0_i32, %c0_i32_0 : i32, i32
  }
  func.func @transform_8(%arg0: i32, %arg1: i32) -> (i32, i32) {
    %c0_i32 = arith.constant 0 : i32
    %c0_i32_0 = arith.constant 0 : i32
    %c0_i32_1 = arith.constant 0 : i32
    return %c0_i32, %c0_i32_0 : i32, i32
  }
  func.func @transform_9(%arg0: i32, %arg1: i32) -> (i32, i32, i32) {
    %c0_i32 = arith.constant 0 : i32
    %c0_i32_0 = arith.constant 0 : i32
    return %arg0, %c0_i32, %arg1 : i32, i32, i32
  }
}

</mosaic_0001>

<llo_original>
// kernel: tpu_custom_call.1
$region0: #{tpu_custom_call.1}
  #allocation0 [shape = 'u32[]', space=smem, size = 0x4, offset = 0x4, fixed_abs, tag = 'smem constant byte address 0x4 - core index']
  #allocation1 [shape = 'u32[144,128]{1,0:T(1,128)}', space=vmem, size = 0x12000, scoped, tag = 'internal scratch']
  %s0 = inlined_call_operand.vmem [shape: f32[2,33,1024], index: 0, kind: input, shape index: {}]
  %s1 = inlined_call_operand.vmem [shape: bf16[128,33], index: 1, kind: input, shape index: {}]
  %s2 = inlined_call_operand.vmem [shape: f32[128,1], index: 2, kind: input, shape index: {}]
  %s3 = inlined_call_operand.vmem [shape: bf16[128,128], index: 3, kind: input, shape index: {}]
  %s4 = inlined_call_operand.vmem [shape: f32[128,1], index: 4, kind: input, shape index: {}]
  %s5 = inlined_call_operand.vmem [shape: bf16[128,128], index: 5, kind: input, shape index: {}]
  %s6 = inlined_call_operand.vmem [shape: f32[128,1], index: 6, kind: input, shape index: {}]
  %s7 = inlined_call_operand.vmem [shape: bf16[128,128], index: 7, kind: input, shape index: {}]
  %s8 = inlined_call_operand.vmem [shape: f32[128,1], index: 8, kind: input, shape index: {}]
  %s9 = inlined_call_operand.hbm [shape: bf16[2,128,1024], index: 9, kind: output, shape index: {}]
  %s10 = sld [smem:[#allocation0]]
  $region92: #{tpu_custom_call.1} parent=0
    _
  %s12 = ssub.s32 1, %s10
  %s13 = scalar_select 0, %s12, %s10
  $region1: #{tpu_custom_call.1} parent=0
    #allocation2 [shape = 'u8[163840]{0}', space=vmem, size = 0x28000, scoped, tag = 'input window, operand 0']
    #allocation3 [shape = 'u8[262144]{0}', space=vmem, size = 0x40000, scoped, tag = 'output window, operand 0']
    #allocation4 [shape = 's32[2]{0}', space=sflag, size = 0x8, scoped, tag = 'scoped memory for tpu_custom_call.1']
    %14 = vsyncpa [#allocation4], 0
    %s15 = scalar_lea.sflag [#allocation4], 1
    %16 = vsyncpa %s15, 0
    loop: start=0, step=1, limit=6
    $region2: #{tpu_custom_call.1} parent=1 // loop_pre_header
      _
    $region3: #{tpu_custom_call.1} parent=1 // loop_header
      %s18 = sphi 0, %s22
      %p19 = scmp.ge.s32.totalorder %s18, 6
      %s25 = sphi 0, %s37
      %s26 = sphi 0, %s33
      %s27 = sphi 0, %s25
      %s28 = sphi 0, %s26
      %s29 = sphi 0, %s27
      %s30 = sphi 0, %s28
      %s42 = sphi 0, %s44
      %s45 = sphi 0, %s42
      %s46 = sphi 0, %s45
      %s62 = sphi 0, %s46
      %s66 = sphi 0, %s66
      %s68 = sphi 0, %s66
      %s69 = sphi 0, %s68
      %s83 = sphi 0, %s69
      %s87 = sphi 0, %s87
      %s89 = sphi 0, %s87
      %s90 = sphi 0, %s89
      %s104 = sphi 0, %s90
      %s108 = sphi 0, %s108
      %s110 = sphi 0, %s108
      %s111 = sphi 0, %s110
      %s125 = sphi 0, %s111
      %s129 = sphi 0, %s129
      %s131 = sphi 0, %s129
      %s132 = sphi 0, %s131
      %s146 = sphi 0, %s132
      %s150 = sphi 0, %s150
      %s152 = sphi 0, %s150
      %s153 = sphi 0, %s152
      %s167 = sphi 0, %s153
      %s171 = sphi 0, %s171
      %s173 = sphi 0, %s171
      %s174 = sphi 0, %s173
      %s188 = sphi 0, %s174
      %s192 = sphi 0, %s192
      %s194 = sphi 0, %s192
      %s195 = sphi 0, %s194
      %s209 = sphi 0, %s195
      %s213 = sphi 0, %s213
      %s215 = sphi 0, %s213
      %s216 = sphi 0, %s215
      %s230 = sphi 0, %s216
      %s238 = sphi 0, %s240
      %s241 = sphi 0, %s238
      %s242 = sphi 0, %s241
      %s258 = sphi 0, %s242
    $region4: #{tpu_custom_call.1} parent=1 // loop_header_branch
      %21 = sbr.rel (%p19) target = $region8
    $region5: #{tpu_custom_call.1} parent=1 // loop_body
      %s23 = ssub.s32 %s18, 1
      %s24 = ssub.s32 %s18, 2
      %s31 = sadd.s32 1, %s26
      %p32 = scmp.ge.s32.totalorder %s31, 2
      %s33 = scalar_select %p32, 0, %s31
      %s34 = sadd.s32 1, %s25
      %s35 = scalar_select %p32, %s34, %s25
      %p36 = scmp.ge.s32.totalorder %s35, 2
      %s37 = scalar_select %p36, 0, %s35
      %s38 = ssub.s32 %s25, %s37
      %s39 = ssub.s32 %s26, %s33
      %s40 = sor.u32 %s38, %s39
      %p41 = scmp.eq.s32.totalorder %s40, 0
      %s43 = sadd.s32 %s42, 1
      %s44 = scalar_select %p41, %s42, %s43
      %p47 = pneg %p41
      %p48 = scmp.eq.s32.totalorder %s18, 3
      %p49 = por %p47, %p48
      %p50 = scmp.ne.s32.totalorder %s42, %s45
      %p51 = scmp.eq.s32.totalorder %s18, 0
      %p52 = por %p50, %p51
      %p53 = scmp.ne.s32.totalorder %s42, %s45
      %p54 = scmp.eq.s32.totalorder %s23, 3
      %p55 = por %p53, %p54
      %p56 = scmp.ne.s32.totalorder %s45, %s46
      %p57 = scmp.eq.s32.totalorder %s23, 0
      %p58 = por %p56, %p57
      %p59 = scmp.ne.s32.totalorder %s45, %s46
      %p60 = scmp.eq.s32.totalorder %s24, 3
      %p61 = por %p59, %p60
      %p63 = scmp.ne.s32.totalorder %s46, %s62
      %p64 = scmp.eq.s32.totalorder %s24, 0
      %p65 = por %p63, %p64
      %s67 = sadd.s32 %s66, 1
      %p70 = scmp.eq.s32.totalorder %s18, 3
      %p71 = scmp.ne.s32.totalorder %s66, %s68
      %p72 = scmp.eq.s32.totalorder %s18, 0
      %p73 = por %p71, %p72
      %p74 = scmp.ne.s32.totalorder %s66, %s68
      %p75 = scmp.eq.s32.totalorder %s23, 3
      %p76 = por %p74, %p75
      %p77 = scmp.ne.s32.totalorder %s68, %s69
      %p78 = scmp.eq.s32.totalorder %s23, 0
      %p79 = por %p77, %p78
      %p80 = scmp.ne.s32.totalorder %s68, %s69
      %p81 = scmp.eq.s32.totalorder %s24, 3
      %p82 = por %p80, %p81
      %p84 = scmp.ne.s32.totalorder %s69, %s83
      %p85 = scmp.eq.s32.totalorder %s24, 0
      %p86 = por %p84, %p85
      %s88 = sadd.s32 %s87, 1
      %p91 = scmp.eq.s32.totalorder %s18, 3
      %p92 = scmp.ne.s32.totalorder %s87, %s89
      %p93 = scmp.eq.s32.totalorder %s18, 0
      %p94 = por %p92, %p93
      %p95 = scmp.ne.s32.totalorder %s87, %s89
      %p96 = scmp.eq.s32.totalorder %s23, 3
      %p97 = por %p95, %p96
      %p98 = scmp.ne.s32.totalorder %s89, %s90
      %p99 = scmp.eq.s32.totalorder %s23, 0
      %p100 = por %p98, %p99
      %p101 = scmp.ne.s32.totalorder %s89, %s90
      %p102 = scmp.eq.s32.totalorder %s24, 3
      %p103 = por %p101, %p102
      %p105 = scmp.ne.s32.totalorder %s90, %s104
      %p106 = scmp.eq.s32.totalorder %s24, 0
      %p107 = por %p105, %p106
      %s109 = sadd.s32 %s108, 1
      %p112 = scmp.eq.s32.totalorder %s18, 3
      %p113 = scmp.ne.s32.totalorder %s108, %s110
      %p114 = scmp.eq.s32.totalorder %s18, 0
      %p115 = por %p113, %p114
      %p116 = scmp.ne.s32.totalorder %s108, %s110
      %p117 = scmp.eq.s32.totalorder %s23, 3
      %p118 = por %p116, %p117
      %p119 = scmp.ne.s32.totalorder %s110, %s111
      %p120 = scmp.eq.s32.totalorder %s23, 0
      %p121 = por %p119, %p120
      %p122 = scmp.ne.s32.totalorder %s110, %s111
      %p123 = scmp.eq.s32.totalorder %s24, 3
      %p124 = por %p122, %p123
      %p126 = scmp.ne.s32.totalorder %s111, %s125
      %p127 = scmp.eq.s32.totalorder %s24, 0
      %p128 = por %p126, %p127
      %s130 = sadd.s32 %s129, 1
      %p133 = scmp.eq.s32.totalorder %s18, 3
      %p134 = scmp.ne.s32.totalorder %s129, %s131
      %p135 = scmp.eq.s32.totalorder %s18, 0
      %p136 = por %p134, %p135
      %p137 = scmp.ne.s32.totalorder %s129, %s131
      %p138 = scmp.eq.s32.totalorder %s23, 3
      %p139 = por %p137, %p138
      %p140 = scmp.ne.s32.totalorder %s131, %s132
      %p141 = scmp.eq.s32.totalorder %s23, 0
      %p142 = por %p140, %p141
      %p143 = scmp.ne.s32.totalorder %s131, %s132
      %p144 = scmp.eq.s32.totalorder %s24, 3
      %p145 = por %p143, %p144
      %p147 = scmp.ne.s32.totalorder %s132, %s146
      %p148 = scmp.eq.s32.totalorder %s24, 0
      %p149 = por %p147, %p148
      %s151 = sadd.s32 %s150, 1
      %p154 = scmp.eq.s32.totalorder %s18, 3
      %p155 = scmp.ne.s32.totalorder %s150, %s152
      %p156 = scmp.eq.s32.totalorder %s18, 0
      %p157 = por %p155, %p156
      %p158 = scmp.ne.s32.totalorder %s150, %s152
      %p159 = scmp.eq.s32.totalorder %s23, 3
      %p160 = por %p158, %p159
      %p161 = scmp.ne.s32.totalorder %s152, %s153
      %p162 = scmp.eq.s32.totalorder %s23, 0
      %p163 = por %p161, %p162
      %p164 = scmp.ne.s32.totalorder %s152, %s153
      %p165 = scmp.eq.s32.totalorder %s24, 3
      %p166 = por %p164, %p165
      %p168 = scmp.ne.s32.totalorder %s153, %s167
      %p169 = scmp.eq.s32.totalorder %s24, 0
      %p170 = por %p168, %p169
      %s172 = sadd.s32 %s171, 1
      %p175 = scmp.eq.s32.totalorder %s18, 3
      %p176 = scmp.ne.s32.totalorder %s171, %s173
      %p177 = scmp.eq.s32.totalorder %s18, 0
      %p178 = por %p176, %p177
      %p179 = scmp.ne.s32.totalorder %s171, %s173
      %p180 = scmp.eq.s32.totalorder %s23, 3
      %p181 = por %p179, %p180
      %p182 = scmp.ne.s32.totalorder %s173, %s174
      %p183 = scmp.eq.s32.totalorder %s23, 0
      %p184 = por %p182, %p183
      %p185 = scmp.ne.s32.totalorder %s173, %s174
      %p186 = scmp.eq.s32.totalorder %s24, 3
      %p187 = por %p185, %p186
      %p189 = scmp.ne.s32.totalorder %s174, %s188
      %p190 = scmp.eq.s32.totalorder %s24, 0
      %p191 = por %p189, %p190
      %s193 = sadd.s32 %s192, 1
      %p196 = scmp.eq.s32.totalorder %s18, 3
      %p197 = scmp.ne.s32.totalorder %s192, %s194
      %p198 = scmp.eq.s32.totalorder %s18, 0
      %p199 = por %p197, %p198
      %p200 = scmp.ne.s32.totalorder %s192, %s194
      %p201 = scmp.eq.s32.totalorder %s23, 3
      %p202 = por %p200, %p201
      %p203 = scmp.ne.s32.totalorder %s194, %s195
      %p204 = scmp.eq.s32.totalorder %s23, 0
      %p205 = por %p203, %p204
      %p206 = scmp.ne.s32.totalorder %s194, %s195
      %p207 = scmp.eq.s32.totalorder %s24, 3
      %p208 = por %p206, %p207
      %p210 = scmp.ne.s32.totalorder %s195, %s209
      %p211 = scmp.eq.s32.totalorder %s24, 0
      %p212 = por %p210, %p211
      %s214 = sadd.s32 %s213, 1
      %p217 = scmp.eq.s32.totalorder %s18, 3
      %p218 = scmp.ne.s32.totalorder %s213, %s215
      %p219 = scmp.eq.s32.totalorder %s18, 0
      %p220 = por %p218, %p219
      %p221 = scmp.ne.s32.totalorder %s213, %s215
      %p222 = scmp.eq.s32.totalorder %s23, 3
      %p223 = por %p221, %p222
      %p224 = scmp.ne.s32.totalorder %s215, %s216
      %p225 = scmp.eq.s32.totalorder %s23, 0
      %p226 = por %p224, %p225
      %p227 = scmp.ne.s32.totalorder %s215, %s216
      %p228 = scmp.eq.s32.totalorder %s24, 3
      %p229 = por %p227, %p228
      %p231 = scmp.ne.s32.totalorder %s216, %s230
      %p232 = scmp.eq.s32.totalorder %s24, 0
      %p233 = por %p231, %p232
      %s234 = ssub.s32 %s25, %s37
      %s235 = ssub.s32 %s26, %s33
      %s236 = sor.u32 %s234, %s235
      %p237 = scmp.eq.s32.totalorder %s236, 0
      %s239 = sadd.s32 %s238, 1
      %s240 = scalar_select %p237, %s238, %s239
      %p243 = pneg %p237
      %p244 = scmp.eq.s32.totalorder %s18, 3
      %p245 = por %p243, %p244
      %p246 = scmp.ne.s32.totalorder %s238, %s241
      %p247 = scmp.eq.s32.totalorder %s18, 0
      %p248 = por %p246, %p247
      %p249 = scmp.ne.s32.totalorder %s238, %s241
      %p250 = scmp.eq.s32.totalorder %s23, 3
      %p251 = por %p249, %p250
      %p252 = scmp.ne.s32.totalorder %s241, %s242
      %p253 = scmp.eq.s32.totalorder %s23, 0
      %p254 = por %p252, %p253
      %p255 = scmp.ne.s32.totalorder %s241, %s242
      %p256 = scmp.eq.s32.totalorder %s24, 3
      %p257 = por %p255, %p256
      %p259 = scmp.ne.s32.totalorder %s242, %s258
      %p260 = scmp.eq.s32.totalorder %s24, 0
      %p261 = por %p259, %p260
      %p262 = scmp.le.s32.totalorder 1, %s18
      %p263 = scmp.lt.s32.totalorder %s18, 5
      %p264 = pnand %p262, %p263
      %p265 = pneg %p264
      // Predicated region
      $region9: #{tpu_custom_call.1} parent=5 // pred_check
        _
      $region10: #{tpu_custom_call.1} parent=5 // pred_check_branch
        %267 = sbr.rel (%p264) target = $region12
      $region11: #{tpu_custom_call.1} parent=5 // pred_region
        %s268 = ssub.s32 %s18, 1
        // Predicated region
        $region13: #{tpu_custom_call.1} parent=11 // pred_check
          %p269 = pneg %p79
        $region14: #{tpu_custom_call.1} parent=11 // pred_check_branch
          %271 = sbr.rel (%p269) target = $region16
        $region15: #{tpu_custom_call.1} parent=11 // pred_region
          _
        $region16: #{tpu_custom_call.1} parent=11 // pred_fallthru
          _
        // Predicated region
        $region17: #{tpu_custom_call.1} parent=11 // pred_check
          %p272 = pneg %p100
        $region18: #{tpu_custom_call.1} parent=11 // pred_check_branch
          %274 = sbr.rel (%p272) target = $region20
        $region19: #{tpu_custom_call.1} parent=11 // pred_region
          _
        $region20: #{tpu_custom_call.1} parent=11 // pred_fallthru
          _
        // Predicated region
        $region21: #{tpu_custom_call.1} parent=11 // pred_check
          %p275 = pneg %p121
        $region22: #{tpu_custom_call.1} parent=11 // pred_check_branch
          %277 = sbr.rel (%p275) target = $region24
        $region23: #{tpu_custom_call.1} parent=11 // pred_region
          _
        $region24: #{tpu_custom_call.1} parent=11 // pred_fallthru
          _
        // Predicated region
        $region25: #{tpu_custom_call.1} parent=11 // pred_check
          %p278 = pneg %p142
        $region26: #{tpu_custom_call.1} parent=11 // pred_check_branch
          %280 = sbr.rel (%p278) target = $region28
        $region27: #{tpu_custom_call.1} parent=11 // pred_region
          _
        $region28: #{tpu_custom_call.1} parent=11 // pred_fallthru
          _
        // Predicated region
        $region29: #{tpu_custom_call.1} parent=11 // pred_check
          %p281 = pneg %p163
        $region30: #{tpu_custom_call.1} parent=11 // pred_check_branch
          %283 = sbr.rel (%p281) target = $region32
        $region31: #{tpu_custom_call.1} parent=11 // pred_region
          _
        $region32: #{tpu_custom_call.1} parent=11 // pred_fallthru
          _
        // Predicated region
        $region33: #{tpu_custom_call.1} parent=11 // pred_check
          %p284 = pneg %p184
        $region34: #{tpu_custom_call.1} parent=11 // pred_check_branch
          %286 = sbr.rel (%p284) target = $region36
        $region35: #{tpu_custom_call.1} parent=11 // pred_region
          _
        $region36: #{tpu_custom_call.1} parent=11 // pred_fallthru
          _
        // Predicated region
        $region37: #{tpu_custom_call.1} parent=11 // pred_check
          %p287 = pneg %p205
        $region38: #{tpu_custom_call.1} parent=11 // pred_check_branch
          %289 = sbr.rel (%p287) target = $region40
        $region39: #{tpu_custom_call.1} parent=11 // pred_region
          _
        $region40: #{tpu_custom_call.1} parent=11 // pred_fallthru
          _
        // Predicated region
        $region41: #{tpu_custom_call.1} parent=11 // pred_check
          %p290 = pneg %p226
        $region42: #{tpu_custom_call.1} parent=11 // pred_check_branch
          %292 = sbr.rel (%p290) target = $region44
        $region43: #{tpu_custom_call.1} parent=11 // pred_region
          _
        $region44: #{tpu_custom_call.1} parent=11 // pred_fallthru
          _
      $region12: #{tpu_custom_call.1} parent=5 // pred_fallthru
        _
      %p293 = scmp.lt.s32.totalorder %s18, 4
      // Predicated region
      $region45: #{tpu_custom_call.1} parent=5 // pred_check
        %p294 = pneg %p293
      $region46: #{tpu_custom_call.1} parent=5 // pred_check_branch
        %296 = sbr.rel (%p294) target = $region48
      $region47: #{tpu_custom_call.1} parent=5 // pred_region
        // Predicated region
        $region49: #{tpu_custom_call.1} parent=47 // pred_check
          %p297 = pneg %p52
        $region50: #{tpu_custom_call.1} parent=47 // pred_check_branch
          %299 = sbr.rel (%p297) target = $region52
        $region51: #{tpu_custom_call.1} parent=47 // pred_region
          %s300 = sand.u32 %s42, 1
          %s301 = sand.u32 %s42, 1
          %s302 = smul.addr %s301, 160
          %s303 = scalar_lea.vmem [#allocation2], %s302
          %s304 = smul.u32 4, %s26
          %s305 = smul.addr %s25, 40
          %s306 = sadd.s32 %s304, %s305
          %s307 = smul.addr %s306, 8
          %s308 = scalar_lea.vmem %s0, %s307
          // Predicated region
          $region53: #{tpu_custom_call.1} parent=51 // pred_check
            _
          $region54: #{tpu_custom_call.1} parent=51 // pred_check_branch
            %310 = sbr.rel (0) target = $region56
          $region55: #{tpu_custom_call.1} parent=51 // pred_region
            // Predicated region
            $region57: #{tpu_custom_call.1} parent=55 // pred_check
              _
            $region58: #{tpu_custom_call.1} parent=55 // pred_check_branch
              %312 = sbr.rel (0) target = $region60
            $region59: #{tpu_custom_call.1} parent=55 // pred_region
              loop: start=0, step=1, limit=1
              $region61: #{tpu_custom_call.1} parent=59 // loop_pre_header
                _
              $region62: #{tpu_custom_call.1} parent=59 // loop_header
                %s314 = sphi 0, %s318
                %p315 = scmp.ge.s32.totalorder %s314, 1
                %s319 = sphi %s308, %s308
                %s320 = sphi %s303, %s303
              $region63: #{tpu_custom_call.1} parent=59 // loop_header_branch
                %317 = sbr.rel (%p315) target = $region67
              $region64: #{tpu_custom_call.1} parent=59 // loop_body
                %v321 = vld [vmem:[%s319] sm:$0xff]
                %322 = vst [vmem:[%s320] sm:$0xff] %v321
                %v323 = vld [vmem:[%s319 + $0x8] sm:$0xff]
                %324 = vst [vmem:[%s320 + $0x8] sm:$0xff] %v323
                %v325 = vld [vmem:[%s319 + $0x10] sm:$0xff]
                %326 = vst [vmem:[%s320 + $0x10] sm:$0xff] %v325
                %v327 = vld [vmem:[%s319 + $0x18] sm:$0xff]
                %328 = vst [vmem:[%s320 + $0x18] sm:$0xff] %v327
                %v329 = vld [vmem:[%s319 + $0x40] sm:$0xff]
                %330 = vst [vmem:[%s320 + $0x20] sm:$0xff] %v329
                %v331 = vld [vmem:[%s319 + $0x48] sm:$0xff]
                %332 = vst [vmem:[%s320 + $0x28] sm:$0xff] %v331
                %v333 = vld [vmem:[%s319 + $0x50] sm:$0xff]
                %334 = vst [vmem:[%s320 + $0x30] sm:$0xff] %v333
                %v335 = vld [vmem:[%s319 + $0x58] sm:$0xff]
                %336 = vst [vmem:[%s320 + $0x38] sm:$0xff] %v335
                %v337 = vld [vmem:[%s319 + $0x80] sm:$0xff]
                %338 = vst [vmem:[%s320 + $0x40] sm:$0xff] %v337
                %v339 = vld [vmem:[%s319 + $0x88] sm:$0xff]
                %340 = vst [vmem:[%s320 + $0x48] sm:$0xff] %v339
                %v341 = vld [vmem:[%s319 + $0x90] sm:$0xff]
                %342 = vst [vmem:[%s320 + $0x50] sm:$0xff] %v341
                %v343 = vld [vmem:[%s319 + $0x98] sm:$0xff]
                %344 = vst [vmem:[%s320 + $0x58] sm:$0xff] %v343
                %v345 = vld [vmem:[%s319 + $0xc0] sm:$0xff]
                %346 = vst [vmem:[%s320 + $0x60] sm:$0xff] %v345
                %v347 = vld [vmem:[%s319 + $0xc8] sm:$0xff]
                %348 = vst [vmem:[%s320 + $0x68] sm:$0xff] %v347
                %v349 = vld [vmem:[%s319 + $0xd0] sm:$0xff]
                %350 = vst [vmem:[%s320 + $0x70] sm:$0xff] %v349
                %v351 = vld [vmem:[%s319 + $0xd8] sm:$0xff]
                %352 = vst [vmem:[%s320 + $0x78] sm:$0xff] %v351
                %v353 = vld [vmem:[%s319 + $0x100] sm:$0xff]
                %354 = vst [vmem:[%s320 + $0x80] sm:$0xff] %v353
                %v355 = vld [vmem:[%s319 + $0x108] sm:$0xff]
                %356 = vst [vmem:[%s320 + $0x88] sm:$0xff] %v355
                %v357 = vld [vmem:[%s319 + $0x110] sm:$0xff]
                %358 = vst [vmem:[%s320 + $0x90] sm:$0xff] %v357
                %v359 = vld [vmem:[%s319 + $0x118] sm:$0xff]
                %360 = vst [vmem:[%s320 + $0x98] sm:$0xff] %v359
              $region65: #{tpu_custom_call.1} parent=59 // loop_footer
                %s318 = sadd.s32 1, %s314
              $region66: #{tpu_custom_call.1} parent=59 // loop_footer_branch
                %313 = sbr.rel target = $region62
              $region67: #{tpu_custom_call.1} parent=59 // loop_exit
                _
            $region60: #{tpu_custom_call.1} parent=55 // pred_fallthru
              _
            // Predicated region
            $region68: #{tpu_custom_call.1} parent=55 // pred_check
              _
            $region69: #{tpu_custom_call.1} parent=55 // pred_check_branch
              %362 = sbr.rel target = $region71
            $region70: #{tpu_custom_call.1} parent=55 // pred_region
              _
            $region71: #{tpu_custom_call.1} parent=55 // pred_fallthru
              _
          $region56: #{tpu_custom_call.1} parent=51 // pred_fallthru
            _
          %363 = vnop
        $region52: #{tpu_custom_call.1} parent=47 // pred_fallthru
          _
      $region48: #{tpu_custom_call.1} parent=5 // pred_fallthru
        _
      %p364 = scmp.le.s32.totalorder 1, %s18
      %p365 = scmp.lt.s32.totalorder %s18, 5
      %p366 = pnand %p364, %p365
      %p367 = pneg %p366
      // Predicated region
      $region72: #{tpu_custom_call.1} parent=5 // pred_check
        _
      $region73: #{tpu_custom_call.1} parent=5 // pred_check_branch
        %369 = sbr.rel (%p366) target = $region75
      $region74: #{tpu_custom_call.1} parent=5 // pred_region
        %s370 = ssub.s32 %s18, 1
        %s371 = sand.u32 %s45, 1
        %s372 = sand.u32 %s45, 1
        %s373 = smul.addr %s372, 160
        %s374 = scalar_lea.vmem [#allocation2], %s373
        // Predicated region
        $region76: #{tpu_custom_call.1} parent=74 // pred_check
          %p375 = pneg %p58
        $region77: #{tpu_custom_call.1} parent=74 // pred_check_branch
          %377 = sbr.rel (%p375) target = $region79
        $region78: #{tpu_custom_call.1} parent=74 // pred_region
          _
        $region79: #{tpu_custom_call.1} parent=74 // pred_fallthru
          _
        %s378 = sand.u32 %s45, 1
        %s379 = sand.u32 %s45, 1
        %s380 = smul.addr %s379, 160
        %s381 = scalar_lea.vmem [#allocation2], %s380
        %p382 = pneg %p58
        %p383 = pneg %p55
        %p384 = pneg %p79
        %p385 = pneg %p76
        %p386 = pneg %p100
        %p387 = pneg %p97
        %p388 = pneg %p121
        %p389 = pneg %p118
        %p390 = pneg %p142
        %p391 = pneg %p139
        %p392 = pneg %p163
        %p393 = pneg %p160
        %p394 = pneg %p184
        %p395 = pneg %p181
        %p396 = pneg %p205
        %p397 = pneg %p202
        %p398 = pneg %p226
        %p399 = pneg %p223
        %p400 = pneg %p254
        %p401 = pneg %p251
        %s402 = sand.u32 %s241, 1
        %s403 = scalar_lea.sflag [#allocation4], %s402
        %s404 = sand.u32 %s241, 1
        %s405 = smul.addr %s404, 256
        %s406 = scalar_lea.vmem [#allocation3], %s405
        %s407 = smul.u32 4, %s28
        %s408 = smul.u32 4, %s28
        %v410 = vld [vmem:[%s374] sm:$0xff]
        %v411 = vld [vmem:[%s374 + $0x8] sm:$0xff]
        %v412 = vld [vmem:[%s374 + $0x10] sm:$0xff]
        %v413 = vld [vmem:[%s374 + $0x18] sm:$0xff]
        %v414 = vld [vmem:[%s374 + $0x20] sm:$0xff]
        %v415 = vld [vmem:[%s374 + $0x28] sm:$0xff]
        %v416 = vld [vmem:[%s374 + $0x30] sm:$0xff]
        %v417 = vld [vmem:[%s374 + $0x38] sm:$0xff]
        %v418 = vld [vmem:[%s374 + $0x40] sm:$0xff]
        %v419 = vld [vmem:[%s374 + $0x48] sm:$0xff]
        %v420 = vld [vmem:[%s374 + $0x50] sm:$0xff]
        %v421 = vld [vmem:[%s374 + $0x58] sm:$0xff]
        %v422 = vld [vmem:[%s374 + $0x60] sm:$0xff]
        %v423 = vld [vmem:[%s374 + $0x68] sm:$0xff]
        %v424 = vld [vmem:[%s374 + $0x70] sm:$0xff]
        %v425 = vld [vmem:[%s374 + $0x78] sm:$0xff]
        %v426 = vld [vmem:[%s374 + $0x80] sm:$0x1]
        %v427 = vld [vmem:[%s374 + $0x88] sm:$0x1]
        %v428 = vld [vmem:[%s374 + $0x90] sm:$0x1]
        %v429 = vld [vmem:[%s374 + $0x98] sm:$0x1]
        %v430 = vpack.c.bf16 %v414, %v410
        %v431 = vpack.c.bf16 %v415, %v411
        %v432 = vpack.c.bf16 %v416, %v412
        %v433 = vpack.c.bf16 %v417, %v413
        %v434 = vpack.c.bf16 %v422, %v418
        %v435 = vpack.c.bf16 %v423, %v419
        %v436 = vpack.c.bf16 %v424, %v420
        %v437 = vpack.c.bf16 %v425, %v421
        %v438 = vpack.c.bf16 %v426, %v426
        %v439 = vpack.c.bf16 %v427, %v427
        %v440 = vpack.c.bf16 %v428, %v428
        %v441 = vpack.c.bf16 %v429, %v429
        %v442 = vld [vmem:[%s1] sm:$0xf]
        %v443 = vld [vmem:[%s1 + $0x4] sm:$0xf]
        %v444 = vld [vmem:[%s1 + $0x8] sm:$0xf]
        %v445 = vld [vmem:[%s1 + $0xc] sm:$0xf]
        %v446 = vld [vmem:[%s1 + $0x10] sm:$0xf]
        %v447 = vld [vmem:[%s1 + $0x14] sm:$0xf]
        %v448 = vld [vmem:[%s1 + $0x18] sm:$0xf]
        %v449 = vld [vmem:[%s1 + $0x1c] sm:$0xf]
        %v450 = vld [vmem:[%s1 + $0x20] sm:$0xf]
        %v451 = vld [vmem:[%s1 + $0x24] sm:$0xf]
        %v452 = vld [vmem:[%s1 + $0x28] sm:$0xf]
        %v453 = vld [vmem:[%s1 + $0x2c] sm:$0xf]
        %v454 = vld [vmem:[%s1 + $0x30] sm:$0xf]
        %v455 = vld [vmem:[%s1 + $0x34] sm:$0xf]
        %v456 = vld [vmem:[%s1 + $0x38] sm:$0xf]
        %v457 = vld [vmem:[%s1 + $0x3c] sm:$0xf]
        %v458 = vld [vmem:[%s2] sm:$0xff]
        %v459 = vld [vmem:[%s2 + $0x8] sm:$0xff]
        %v460 = vld [vmem:[%s2 + $0x10] sm:$0xff]
        %v461 = vld [vmem:[%s2 + $0x18] sm:$0xff]
        %v462 = vld [vmem:[%s2 + $0x20] sm:$0xff]
        %v463 = vld [vmem:[%s2 + $0x28] sm:$0xff]
        %v464 = vld [vmem:[%s2 + $0x30] sm:$0xff]
        %v465 = vld [vmem:[%s2 + $0x38] sm:$0xff]
        %v466 = vld [vmem:[%s2 + $0x40] sm:$0xff]
        %v467 = vld [vmem:[%s2 + $0x48] sm:$0xff]
        %v468 = vld [vmem:[%s2 + $0x50] sm:$0xff]
        %v469 = vld [vmem:[%s2 + $0x58] sm:$0xff]
        %v470 = vld [vmem:[%s2 + $0x60] sm:$0xff]
        %v471 = vld [vmem:[%s2 + $0x68] sm:$0xff]
        %v472 = vld [vmem:[%s2 + $0x70] sm:$0xff]
        %v473 = vld [vmem:[%s2 + $0x78] sm:$0xff]
        %475 = vset.pattern.permute.xlu0 0
        %476 = vperm.xlu0 %475, %v458
        %v477 = vpop.permute.xlu0 %476
        %480 = vset.pattern.permute.xlu0 0
        %481 = vperm.xlu0 %480, %v459
        %v482 = vpop.permute.xlu0 %481
        %485 = vset.pattern.permute.xlu0 0
        %486 = vperm.xlu0 %485, %v460
        %v487 = vpop.permute.xlu0 %486
        %490 = vset.pattern.permute.xlu0 0
        %491 = vperm.xlu0 %490, %v461
        %v492 = vpop.permute.xlu0 %491
        %495 = vset.pattern.permute.xlu0 0
        %496 = vperm.xlu0 %495, %v462
        %v497 = vpop.permute.xlu0 %496
        %500 = vset.pattern.permute.xlu0 0
        %501 = vperm.xlu0 %500, %v463
        %v502 = vpop.permute.xlu0 %501
        %505 = vset.pattern.permute.xlu0 0
        %506 = vperm.xlu0 %505, %v464
        %v507 = vpop.permute.xlu0 %506
        %510 = vset.pattern.permute.xlu0 0
        %511 = vperm.xlu0 %510, %v465
        %v512 = vpop.permute.xlu0 %511
        %515 = vset.pattern.permute.xlu0 0
        %516 = vperm.xlu0 %515, %v466
        %v517 = vpop.permute.xlu0 %516
        %520 = vset.pattern.permute.xlu0 0
        %521 = vperm.xlu0 %520, %v467
        %v522 = vpop.permute.xlu0 %521
        %525 = vset.pattern.permute.xlu0 0
        %526 = vperm.xlu0 %525, %v468
        %v527 = vpop.permute.xlu0 %526
        %530 = vset.pattern.permute.xlu0 0
        %531 = vperm.xlu0 %530, %v469
        %v532 = vpop.permute.xlu0 %531
        %535 = vset.pattern.permute.xlu0 0
        %536 = vperm.xlu0 %535, %v470
        %v537 = vpop.permute.xlu0 %536
        %540 = vset.pattern.permute.xlu0 0
        %541 = vperm.xlu0 %540, %v471
        %v542 = vpop.permute.xlu0 %541
        %545 = vset.pattern.permute.xlu0 0
        %546 = vperm.xlu0 %545, %v472
        %v547 = vpop.permute.xlu0 %546
        %550 = vset.pattern.permute.xlu0 0
        %551 = vperm.xlu0 %550, %v473
        %v552 = vpop.permute.xlu0 %551
        %v570 = vunpack.c.l.b16 %v442
        %v571 = vunpack.c.l.b16 %v443
        %v572 = vunpack.c.l.b16 %v444
        %v573 = vunpack.c.l.b16 %v445
        %v574 = vunpack.c.l.b16 %v446
        %v575 = vunpack.c.l.b16 %v447
        %v576 = vunpack.c.l.b16 %v448
        %v577 = vunpack.c.l.b16 %v449
        %v578 = vunpack.c.l.b16 %v450
        %v579 = vunpack.c.l.b16 %v451
        %v580 = vunpack.c.l.b16 %v452
        %v581 = vunpack.c.l.b16 %v453
        %v582 = vunpack.c.l.b16 %v454
        %v583 = vunpack.c.l.b16 %v455
        %v584 = vunpack.c.l.b16 %v456
        %v585 = vunpack.c.l.b16 %v457
        %v586 = vpack.c.b16 %v571, %v570
        %v587 = vpack.c.b16 %v573, %v572
        %v588 = vpack.c.b16 %v575, %v574
        %v589 = vpack.c.b16 %v577, %v576
        %v590 = vpack.c.b16 %v579, %v578
        %v591 = vpack.c.b16 %v581, %v580
        %v592 = vpack.c.b16 %v583, %v582
        %v593 = vpack.c.b16 %v585, %v584
        %vm594 = vcmask 269312
        %v596 = vsel %vm594, %v586, 0
        %v599 = vsel %vm594, %v587, 0
        %v602 = vsel %vm594, %v588, 0
        %v605 = vsel %vm594, %v589, 0
        %v608 = vsel %vm594, %v590, 0
        %v611 = vsel %vm594, %v591, 0
        %v614 = vsel %vm594, %v592, 0
        %v617 = vsel %vm594, %v593, 0
        %vm619 = vcmask 1040384
        %v620 = vsel 0, 4294967295, 65535
        %v621 = vsel %vm619, %v620, 0
        %v623 = vand.u32 %v438, %v621
        %v626 = vand.u32 %v439, %v621
        %v629 = vand.u32 %v440, %v621
        %v632 = vand.u32 %v441, %v621
        %634 = vmatprep.subr.bf16.mxu0 %v431
        %635 = vmatpush1.bf16.msra.mxu0 %v430
        %636 = vmatprep.subr.bf16.mxu0 %v435
        %637 = vmatpush1.bf16.msra.mxu0 %v434
        %638 = vmatprep.subr.bf16.mxu0 %v626
        %639 = vmatpush1.bf16.msra.mxu0 %v623
        %640 = vmatprep.subr.bf16.mxu0 0
        %641 = vmatpush1.bf16.msra.mxu0 0
        %642 = vmatprep.subr.bf16.mxu0 0
        %643 = vmatpush1.bf16.msra.mxu0 0
        %644 = vmatprep.subr.bf16.mxu0 0
        %645 = vmatpush1.bf16.msra.mxu0 0
        %646 = vmatprep.subr.bf16.mxu0 0
        %647 = vmatpush1.bf16.msra.mxu0 0
        %648 = vmatprep.subr.bf16.mxu0 0
        %649 = vmatpush1.bf16.msra.mxu0 0
        %650 = vmatprep.subr.bf16.mxu0 0
        %651 = vmatpush1.bf16.msra.mxu0 0
        %652 = vmatprep.subr.bf16.mxu0 0
        %653 = vmatpush1.bf16.msra.mxu0 0
        %654 = vmatprep.subr.bf16.mxu0 0
        %655 = vmatpush1.bf16.msra.mxu0 0
        %656 = vmatprep.subr.bf16.mxu0 0
        %657 = vmatpush1.bf16.msra.mxu0 0
        %658 = vmatprep.subr.bf16.mxu0 0
        %659 = vmatpush1.bf16.msra.mxu0 0
        %660 = vmatprep.subr.bf16.mxu0 0
        %661 = vmatpush1.bf16.msra.mxu0 0
        %662 = vmatprep.subr.bf16.mxu0 0
        %663 = vmatpush1.bf16.msra.mxu0 0
        %664 = vmatprep.subr.bf16.mxu0 0
        %665 = vmatpush1.bf16.msra.mxu0 0
        %666 = vmatprep.mubr.bf16.mxu0 0
        %667 = vmatmul.mubr.bf16.gmra.mrb[0].mxu0 %v596
        %v668 = vpop.f32.mrb[0].mxu0
        %v669 = vadd.f32 %v477, %v668
        %v670 = vpop.f32.mrb[0].mxu0
        %v671 = vadd.f32 %v477, %v670
        %v672 = vpop.f32.mrb[0].mxu0
        %v673 = vadd.f32 %v482, %v672
        %v674 = vpop.f32.mrb[0].mxu0
        %v675 = vadd.f32 %v482, %v674
        %676 = vmatprep.mubr.bf16.mxu0 0
        %677 = vmatmul.mubr.bf16.gmra.mrb[0].mxu0 %v599
        %v678 = vpop.f32.mrb[0].mxu0
        %v679 = vadd.f32 %v487, %v678
        %v680 = vpop.f32.mrb[0].mxu0
        %v681 = vadd.f32 %v487, %v680
        %v682 = vpop.f32.mrb[0].mxu0
        %v683 = vadd.f32 %v492, %v682
        %v684 = vpop.f32.mrb[0].mxu0
        %v685 = vadd.f32 %v492, %v684
        %686 = vmatprep.mubr.bf16.mxu0 0
        %687 = vmatmul.mubr.bf16.gmra.mrb[0].mxu0 %v602
        %v688 = vpop.f32.mrb[0].mxu0
        %v689 = vadd.f32 %v497, %v688
        %v690 = vpop.f32.mrb[0].mxu0
        %v691 = vadd.f32 %v497, %v690
        %v692 = vpop.f32.mrb[0].mxu0
        %v693 = vadd.f32 %v502, %v692
        %v694 = vpop.f32.mrb[0].mxu0
        %v695 = vadd.f32 %v502, %v694
        %696 = vmatprep.mubr.bf16.mxu0 0
        %697 = vmatmul.mubr.bf16.gmra.mrb[0].mxu0 %v605
        %v698 = vpop.f32.mrb[0].mxu0
        %v699 = vadd.f32 %v507, %v698
        %v700 = vpop.f32.mrb[0].mxu0
        %v701 = vadd.f32 %v507, %v700
        %v702 = vpop.f32.mrb[0].mxu0
        %v703 = vadd.f32 %v512, %v702
        %v704 = vpop.f32.mrb[0].mxu0
        %v705 = vadd.f32 %v512, %v704
        %706 = vmatprep.mubr.bf16.mxu0 0
        %707 = vmatmul.mubr.bf16.gmra.mrb[0].mxu0 %v608
        %v708 = vpop.f32.mrb[0].mxu0
        %v709 = vadd.f32 %v517, %v708
        %v710 = vpop.f32.mrb[0].mxu0
        %v711 = vadd.f32 %v517, %v710
        %v712 = vpop.f32.mrb[0].mxu0
        %v713 = vadd.f32 %v522, %v712
        %v714 = vpop.f32.mrb[0].mxu0
        %v715 = vadd.f32 %v522, %v714
        %716 = vmatprep.mubr.bf16.mxu0 0
        %717 = vmatmul.mubr.bf16.gmra.mrb[0].mxu0 %v611
        %v718 = vpop.f32.mrb[0].mxu0
        %v719 = vadd.f32 %v527, %v718
        %v720 = vpop.f32.mrb[0].mxu0
        %v721 = vadd.f32 %v527, %v720
        %v722 = vpop.f32.mrb[0].mxu0
        %v723 = vadd.f32 %v532, %v722
        %v724 = vpop.f32.mrb[0].mxu0
        %v725 = vadd.f32 %v532, %v724
        %726 = vmatprep.mubr.bf16.mxu0 0
        %727 = vmatmul.mubr.bf16.gmra.mrb[0].mxu0 %v614
        %v728 = vpop.f32.mrb[0].mxu0
        %v729 = vadd.f32 %v537, %v728
        %v730 = vpop.f32.mrb[0].mxu0
        %v731 = vadd.f32 %v537, %v730
        %v732 = vpop.f32.mrb[0].mxu0
        %v733 = vadd.f32 %v542, %v732
        %v734 = vpop.f32.mrb[0].mxu0
        %v735 = vadd.f32 %v542, %v734
        %736 = vmatprep.mubr.bf16.mxu0 0
        %737 = vmatmul.mubr.bf16.gmra.mrb[0].mxu0 %v617
        %v738 = vpop.f32.mrb[0].mxu0
        %v739 = vadd.f32 %v547, %v738
        %v740 = vpop.f32.mrb[0].mxu0
        %v741 = vadd.f32 %v547, %v740
        %v742 = vpop.f32.mrb[0].mxu0
        %v743 = vadd.f32 %v552, %v742
        %v744 = vpop.f32.mrb[0].mxu0
        %v745 = vadd.f32 %v552, %v744
        %746 = vdwg.mxu0
        %747 = vmatprep.subr.bf16.mxu0 %v433
        %748 = vmatpush1.bf16.msra.mxu0 %v432
        %749 = vmatprep.subr.bf16.mxu0 %v437
        %750 = vmatpush1.bf16.msra.mxu0 %v436
        %751 = vmatprep.subr.bf16.mxu0 %v632
        %752 = vmatpush1.bf16.msra.mxu0 %v629
        %753 = vmatprep.subr.bf16.mxu0 0
        %754 = vmatpush1.bf16.msra.mxu0 0
        %755 = vmatprep.subr.bf16.mxu0 0
        %756 = vmatpush1.bf16.msra.mxu0 0
        %757 = vmatprep.subr.bf16.mxu0 0
        %758 = vmatpush1.bf16.msra.mxu0 0
        %759 = vmatprep.subr.bf16.mxu0 0
        %760 = vmatpush1.bf16.msra.mxu0 0
        %761 = vmatprep.subr.bf16.mxu0 0
        %762 = vmatpush1.bf16.msra.mxu0 0
        %763 = vmatprep.subr.bf16.mxu0 0
        %764 = vmatpush1.bf16.msra.mxu0 0
        %765 = vmatprep.subr.bf16.mxu0 0
        %766 = vmatpush1.bf16.msra.mxu0 0
        %767 = vmatprep.subr.bf16.mxu0 0
        %768 = vmatpush1.bf16.msra.mxu0 0
        %769 = vmatprep.subr.bf16.mxu0 0
        %770 = vmatpush1.bf16.msra.mxu0 0
        %771 = vmatprep.subr.bf16.mxu0 0
        %772 = vmatpush1.bf16.msra.mxu0 0
        %773 = vmatprep.subr.bf16.mxu0 0
        %774 = vmatpush1.bf16.msra.mxu0 0
        %775 = vmatprep.subr.bf16.mxu0 0
        %776 = vmatpush1.bf16.msra.mxu0 0
        %777 = vmatprep.subr.bf16.mxu0 0
        %778 = vmatpush1.bf16.msra.mxu0 0
        %779 = vmatprep.mubr.bf16.mxu0 0
        %780 = vmatmul.mubr.bf16.gmra.mrb[0].mxu0 %v596
        %v781 = vpop.f32.mrb[0].mxu0
        %v782 = vadd.f32 %v477, %v781
        %v783 = vpop.f32.mrb[0].mxu0
        %v784 = vadd.f32 %v477, %v783
        %v785 = vpop.f32.mrb[0].mxu0
        %v786 = vadd.f32 %v482, %v785
        %v787 = vpop.f32.mrb[0].mxu0
        %v788 = vadd.f32 %v482, %v787
        %789 = vmatprep.mubr.bf16.mxu0 0
        %790 = vmatmul.mubr.bf16.gmra.mrb[0].mxu0 %v599
        %v791 = vpop.f32.mrb[0].mxu0
        %v792 = vadd.f32 %v487, %v791
        %v793 = vpop.f32.mrb[0].mxu0
        %v794 = vadd.f32 %v487, %v793
        %v795 = vpop.f32.mrb[0].mxu0
        %v796 = vadd.f32 %v492, %v795
        %v797 = vpop.f32.mrb[0].mxu0
        %v798 = vadd.f32 %v492, %v797
        %799 = vmatprep.mubr.bf16.mxu0 0
        %800 = vmatmul.mubr.bf16.gmra.mrb[0].mxu0 %v602
        %v801 = vpop.f32.mrb[0].mxu0
        %v802 = vadd.f32 %v497, %v801
        %v803 = vpop.f32.mrb[0].mxu0
        %v804 = vadd.f32 %v497, %v803
        %v805 = vpop.f32.mrb[0].mxu0
        %v806 = vadd.f32 %v502, %v805
        %v807 = vpop.f32.mrb[0].mxu0
        %v808 = vadd.f32 %v502, %v807
        %809 = vmatprep.mubr.bf16.mxu0 0
        %810 = vmatmul.mubr.bf16.gmra.mrb[0].mxu0 %v605
        %v811 = vpop.f32.mrb[0].mxu0
        %v812 = vadd.f32 %v507, %v811
        %v813 = vpop.f32.mrb[0].mxu0
        %v814 = vadd.f32 %v507, %v813
        %v815 = vpop.f32.mrb[0].mxu0
        %v816 = vadd.f32 %v512, %v815
        %v817 = vpop.f32.mrb[0].mxu0
        %v818 = vadd.f32 %v512, %v817
        %819 = vmatprep.mubr.bf16.mxu0 0
        %820 = vmatmul.mubr.bf16.gmra.mrb[0].mxu0 %v608
        %v821 = vpop.f32.mrb[0].mxu0
        %v822 = vadd.f32 %v517, %v821
        %v823 = vpop.f32.mrb[0].mxu0
        %v824 = vadd.f32 %v517, %v823
        %v825 = vpop.f32.mrb[0].mxu0
        %v826 = vadd.f32 %v522, %v825
        %v827 = vpop.f32.mrb[0].mxu0
        %v828 = vadd.f32 %v522, %v827
        %829 = vmatprep.mubr.bf16.mxu0 0
        %830 = vmatmul.mubr.bf16.gmra.mrb[0].mxu0 %v611
        %v831 = vpop.f32.mrb[0].mxu0
        %v832 = vadd.f32 %v527, %v831
        %v833 = vpop.f32.mrb[0].mxu0
        %v834 = vadd.f32 %v527, %v833
        %v835 = vpop.f32.mrb[0].mxu0
        %v836 = vadd.f32 %v532, %v835
        %v837 = vpop.f32.mrb[0].mxu0
        %v838 = vadd.f32 %v532, %v837
        %839 = vmatprep.mubr.bf16.mxu0 0
        %840 = vmatmul.mubr.bf16.gmra.mrb[0].mxu0 %v614
        %v841 = vpop.f32.mrb[0].mxu0
        %v842 = vadd.f32 %v537, %v841
        %v843 = vpop.f32.mrb[0].mxu0
        %v844 = vadd.f32 %v537, %v843
        %v845 = vpop.f32.mrb[0].mxu0
        %v846 = vadd.f32 %v542, %v845
        %v847 = vpop.f32.mrb[0].mxu0
        %v848 = vadd.f32 %v542, %v847
        %849 = vmatprep.mubr.bf16.mxu0 0
        %850 = vmatmul.mubr.bf16.gmra.mrb[0].mxu0 %v617
        %v851 = vpop.f32.mrb[0].mxu0
        %v852 = vadd.f32 %v547, %v851
        %v853 = vpop.f32.mrb[0].mxu0
        %v854 = vadd.f32 %v547, %v853
        %v855 = vpop.f32.mrb[0].mxu0
        %v856 = vadd.f32 %v552, %v855
        %v857 = vpop.f32.mrb[0].mxu0
        %v858 = vadd.f32 %v552, %v857
        %859 = vdwg.mxu0
        %v860 = vmax.f32 %v669, 0.0
        %v861 = vmax.f32 %v671, 0.0
        %v862 = vmax.f32 %v782, 0.0
        %v863 = vmax.f32 %v784, 0.0
        %v864 = vmax.f32 %v673, 0.0
        %v865 = vmax.f32 %v675, 0.0
        %v866 = vmax.f32 %v786, 0.0
        %v867 = vmax.f32 %v788, 0.0
        %v868 = vmax.f32 %v679, 0.0
        %v869 = vmax.f32 %v681, 0.0
        %v870 = vmax.f32 %v792, 0.0
        %v871 = vmax.f32 %v794, 0.0
        %v872 = vmax.f32 %v683, 0.0
        %v873 = vmax.f32 %v685, 0.0
        %v874 = vmax.f32 %v796, 0.0
        %v875 = vmax.f32 %v798, 0.0
        %v876 = vmax.f32 %v689, 0.0
        %v877 = vmax.f32 %v691, 0.0
        %v878 = vmax.f32 %v802, 0.0
        %v879 = vmax.f32 %v804, 0.0
        %v880 = vmax.f32 %v693, 0.0
        %v881 = vmax.f32 %v695, 0.0
        %v882 = vmax.f32 %v806, 0.0
        %v883 = vmax.f32 %v808, 0.0
        %v884 = vmax.f32 %v699, 0.0
        %v885 = vmax.f32 %v701, 0.0
        %v886 = vmax.f32 %v812, 0.0
        %v887 = vmax.f32 %v814, 0.0
        %v888 = vmax.f32 %v703, 0.0
        %v889 = vmax.f32 %v705, 0.0
        %v890 = vmax.f32 %v816, 0.0
        %v891 = vmax.f32 %v818, 0.0
        %v892 = vmax.f32 %v709, 0.0
        %v893 = vmax.f32 %v711, 0.0
        %v894 = vmax.f32 %v822, 0.0
        %v895 = vmax.f32 %v824, 0.0
        %v896 = vmax.f32 %v713, 0.0
        %v897 = vmax.f32 %v715, 0.0
        %v898 = vmax.f32 %v826, 0.0
        %v899 = vmax.f32 %v828, 0.0
        %v900 = vmax.f32 %v719, 0.0
        %v901 = vmax.f32 %v721, 0.0
        %v902 = vmax.f32 %v832, 0.0
        %v903 = vmax.f32 %v834, 0.0
        %v904 = vmax.f32 %v723, 0.0
        %v905 = vmax.f32 %v725, 0.0
        %v906 = vmax.f32 %v836, 0.0
        %v907 = vmax.f32 %v838, 0.0
        %v908 = vmax.f32 %v729, 0.0
        %v909 = vmax.f32 %v731, 0.0
        %v910 = vmax.f32 %v842, 0.0
        %v911 = vmax.f32 %v844, 0.0
        %v912 = vmax.f32 %v733, 0.0
        %v913 = vmax.f32 %v735, 0.0
        %v914 = vmax.f32 %v846, 0.0
        %v915 = vmax.f32 %v848, 0.0
        %v916 = vmax.f32 %v739, 0.0
        %v917 = vmax.f32 %v741, 0.0
        %v918 = vmax.f32 %v852, 0.0
        %v919 = vmax.f32 %v854, 0.0
        %v920 = vmax.f32 %v743, 0.0
        %v921 = vmax.f32 %v745, 0.0
        %v922 = vmax.f32 %v856, 0.0
        %v923 = vmax.f32 %v858, 0.0
        %v924 = vpack.c.bf16 %v864, %v860
        %v925 = vpack.c.bf16 %v865, %v861
        %v926 = vpack.c.bf16 %v866, %v862
        %v927 = vpack.c.bf16 %v867, %v863
        %v928 = vpack.c.bf16 %v872, %v868
        %v929 = vpack.c.bf16 %v873, %v869
        %v930 = vpack.c.bf16 %v874, %v870
        %v931 = vpack.c.bf16 %v875, %v871
        %v932 = vpack.c.bf16 %v880, %v876
        %v933 = vpack.c.bf16 %v881, %v877
        %v934 = vpack.c.bf16 %v882, %v878
        %v935 = vpack.c.bf16 %v883, %v879
        %v936 = vpack.c.bf16 %v888, %v884
        %v937 = vpack.c.bf16 %v889, %v885
        %v938 = vpack.c.bf16 %v890, %v886
        %v939 = vpack.c.bf16 %v891, %v887
        %v940 = vpack.c.bf16 %v896, %v892
        %v941 = vpack.c.bf16 %v897, %v893
        %v942 = vpack.c.bf16 %v898, %v894
        %v943 = vpack.c.bf16 %v899, %v895
        %v944 = vpack.c.bf16 %v904, %v900
        %v945 = vpack.c.bf16 %v905, %v901
        %v946 = vpack.c.bf16 %v906, %v902
        %v947 = vpack.c.bf16 %v907, %v903
        %v948 = vpack.c.bf16 %v912, %v908
        %v949 = vpack.c.bf16 %v913, %v909
        %v950 = vpack.c.bf16 %v914, %v910
        %v951 = vpack.c.bf16 %v915, %v911
        %v952 = vpack.c.bf16 %v920, %v916
        %v953 = vpack.c.bf16 %v921, %v917
        %v954 = vpack.c.bf16 %v922, %v918
        %v955 = vpack.c.bf16 %v923, %v919
        %v956 = vld [vmem:[%s3] sm:$0xf]
        %v957 = vld [vmem:[%s3 + $0x4] sm:$0xf]
        %v958 = vld [vmem:[%s3 + $0x8] sm:$0xf]
        %v959 = vld [vmem:[%s3 + $0xc] sm:$0xf]
        %v960 = vld [vmem:[%s3 + $0x10] sm:$0xf]
        %v961 = vld [vmem:[%s3 + $0x14] sm:$0xf]
        %v962 = vld [vmem:[%s3 + $0x18] sm:$0xf]
        %v963 = vld [vmem:[%s3 + $0x1c] sm:$0xf]
        %v964 = vld [vmem:[%s3 + $0x20] sm:$0xf]
        %v965 = vld [vmem:[%s3 + $0x24] sm:$0xf]
        %v966 = vld [vmem:[%s3 + $0x28] sm:$0xf]
        %v967 = vld [vmem:[%s3 + $0x2c] sm:$0xf]
        %v968 = vld [vmem:[%s3 + $0x30] sm:$0xf]
        %v969 = vld [vmem:[%s3 + $0x34] sm:$0xf]
        %v970 = vld [vmem:[%s3 + $0x38] sm:$0xf]
        %v971 = vld [vmem:[%s3 + $0x3c] sm:$0xf]
        %v972 = vld [vmem:[%s4] sm:$0xff]
        %v973 = vld [vmem:[%s4 + $0x8] sm:$0xff]
        %v974 = vld [vmem:[%s4 + $0x10] sm:$0xff]
        %v975 = vld [vmem:[%s4 + $0x18] sm:$0xff]
        %v976 = vld [vmem:[%s4 + $0x20] sm:$0xff]
        %v977 = vld [vmem:[%s4 + $0x28] sm:$0xff]
        %v978 = vld [vmem:[%s4 + $0x30] sm:$0xff]
        %v979 = vld [vmem:[%s4 + $0x38] sm:$0xff]
        %v980 = vld [vmem:[%s4 + $0x40] sm:$0xff]
        %v981 = vld [vmem:[%s4 + $0x48] sm:$0xff]
        %v982 = vld [vmem:[%s4 + $0x50] sm:$0xff]
        %v983 = vld [vmem:[%s4 + $0x58] sm:$0xff]
        %v984 = vld [vmem:[%s4 + $0x60] sm:$0xff]
        %v985 = vld [vmem:[%s4 + $0x68] sm:$0xff]
        %v986 = vld [vmem:[%s4 + $0x70] sm:$0xff]
        %v987 = vld [vmem:[%s4 + $0x78] sm:$0xff]
        %989 = vset.pattern.permute.xlu0 0
        %990 = vperm.xlu0 %989, %v972
        %v991 = vpop.permute.xlu0 %990
        %994 = vset.pattern.permute.xlu0 0
        %995 = vperm.xlu0 %994, %v973
        %v996 = vpop.permute.xlu0 %995
        %999 = vset.pattern.permute.xlu0 0
        %1000 = vperm.xlu0 %999, %v974
        %v1001 = vpop.permute.xlu0 %1000
        %1004 = vset.pattern.permute.xlu0 0
        %1005 = vperm.xlu0 %1004, %v975
        %v1006 = vpop.permute.xlu0 %1005
        %1009 = vset.pattern.permute.xlu0 0
        %1010 = vperm.xlu0 %1009, %v976
        %v1011 = vpop.permute.xlu0 %1010
        %1014 = vset.pattern.permute.xlu0 0
        %1015 = vperm.xlu0 %1014, %v977
        %v1016 = vpop.permute.xlu0 %1015
        %1019 = vset.pattern.permute.xlu0 0
        %1020 = vperm.xlu0 %1019, %v978
        %v1021 = vpop.permute.xlu0 %1020
        %1024 = vset.pattern.permute.xlu0 0
        %1025 = vperm.xlu0 %1024, %v979
        %v1026 = vpop.permute.xlu0 %1025
        %1029 = vset.pattern.permute.xlu0 0
        %1030 = vperm.xlu0 %1029, %v980
        %v1031 = vpop.permute.xlu0 %1030
        %1034 = vset.pattern.permute.xlu0 0
        %1035 = vperm.xlu0 %1034, %v981
        %v1036 = vpop.permute.xlu0 %1035
        %1039 = vset.pattern.permute.xlu0 0
        %1040 = vperm.xlu0 %1039, %v982
        %v1041 = vpop.permute.xlu0 %1040
        %1044 = vset.pattern.permute.xlu0 0
        %1045 = vperm.xlu0 %1044, %v983
        %v1046 = vpop.permute.xlu0 %1045
        %1049 = vset.pattern.permute.xlu0 0
        %1050 = vperm.xlu0 %1049, %v984
        %v1051 = vpop.permute.xlu0 %1050
        %1054 = vset.pattern.permute.xlu0 0
        %1055 = vperm.xlu0 %1054, %v985
        %v1056 = vpop.permute.xlu0 %1055
        %1059 = vset.pattern.permute.xlu0 0
        %1060 = vperm.xlu0 %1059, %v986
        %v1061 = vpop.permute.xlu0 %1060
        %1064 = vset.pattern.permute.xlu0 0
        %1065 = vperm.xlu0 %1064, %v987
        %v1066 = vpop.permute.xlu0 %1065
        %v1084 = vunpack.c.l.b16 %v956
        %v1085 = vunpack.c.l.b16 %v957
        %v1086 = vunpack.c.l.b16 %v958
        %v1087 = vunpack.c.l.b16 %v959
        %v1088 = vunpack.c.l.b16 %v960
        %v1089 = vunpack.c.l.b16 %v961
        %v1090 = vunpack.c.l.b16 %v962
        %v1091 = vunpack.c.l.b16 %v963
        %v1092 = vunpack.c.l.b16 %v964
        %v1093 = vunpack.c.l.b16 %v965
        %v1094 = vunpack.c.l.b16 %v966
        %v1095 = vunpack.c.l.b16 %v967
        %v1096 = vunpack.c.l.b16 %v968
        %v1097 = vunpack.c.l.b16 %v969
        %v1098 = vunpack.c.l.b16 %v970
        %v1099 = vunpack.c.l.b16 %v971
        %v1100 = vpack.c.b16 %v1085, %v1084
        %v1101 = vpack.c.b16 %v1087, %v1086
        %v1102 = vpack.c.b16 %v1089, %v1088
        %v1103 = vpack.c.b16 %v1091, %v1090
        %v1104 = vpack.c.b16 %v1093, %v1092
        %v1105 = vpack.c.b16 %v1095, %v1094
        %v1106 = vpack.c.b16 %v1097, %v1096
        %v1107 = vpack.c.b16 %v1099, %v1098
        %1116 = vmatprep.subr.bf16.mxu0 %v925
        %1117 = vmatpush1.bf16.msra.mxu0 %v924
        %1118 = vmatprep.subr.bf16.mxu0 %v929
        %1119 = vmatpush1.bf16.msra.mxu0 %v928
        %1120 = vmatprep.subr.bf16.mxu0 %v933
        %1121 = vmatpush1.bf16.msra.mxu0 %v932
        %1122 = vmatprep.subr.bf16.mxu0 %v937
        %1123 = vmatpush1.bf16.msra.mxu0 %v936
        %1124 = vmatprep.subr.bf16.mxu0 %v941
        %1125 = vmatpush1.bf16.msra.mxu0 %v940
        %1126 = vmatprep.subr.bf16.mxu0 %v945
        %1127 = vmatpush1.bf16.msra.mxu0 %v944
        %1128 = vmatprep.subr.bf16.mxu0 %v949
        %1129 = vmatpush1.bf16.msra.mxu0 %v948
        %1130 = vmatprep.subr.bf16.mxu0 %v953
        %1131 = vmatpush1.bf16.msra.mxu0 %v952
        %1132 = vmatprep.subr.bf16.mxu0 0
        %1133 = vmatpush1.bf16.msra.mxu0 0
        %1134 = vmatprep.subr.bf16.mxu0 0
        %1135 = vmatpush1.bf16.msra.mxu0 0
        %1136 = vmatprep.subr.bf16.mxu0 0
        %1137 = vmatpush1.bf16.msra.mxu0 0
        %1138 = vmatprep.subr.bf16.mxu0 0
        %1139 = vmatpush1.bf16.msra.mxu0 0
        %1140 = vmatprep.subr.bf16.mxu0 0
        %1141 = vmatpush1.bf16.msra.mxu0 0
        %1142 = vmatprep.subr.bf16.mxu0 0
        %1143 = vmatpush1.bf16.msra.mxu0 0
        %1144 = vmatprep.subr.bf16.mxu0 0
        %1145 = vmatpush1.bf16.msra.mxu0 0
        %1146 = vmatprep.subr.bf16.mxu0 0
        %1147 = vmatpush1.bf16.msra.mxu0 0
        %1148 = vmatprep.mubr.bf16.mxu0 0
        %1149 = vmatmul.mubr.bf16.gmra.mrb[0].mxu0 %v1100
        %v1150 = vpop.f32.mrb[0].mxu0
        %v1151 = vadd.f32 %v991, %v1150
        %v1152 = vpop.f32.mrb[0].mxu0
        %v1153 = vadd.f32 %v991, %v1152
        %v1154 = vpop.f32.mrb[0].mxu0
        %v1155 = vadd.f32 %v996, %v1154
        %v1156 = vpop.f32.mrb[0].mxu0
        %v1157 = vadd.f32 %v996, %v1156
        %1158 = vmatprep.mubr.bf16.mxu0 0
        %1159 = vmatmul.mubr.bf16.gmra.mrb[0].mxu0 %v1101
        %v1160 = vpop.f32.mrb[0].mxu0
        %v1161 = vadd.f32 %v1001, %v1160
        %v1162 = vpop.f32.mrb[0].mxu0
        %v1163 = vadd.f32 %v1001, %v1162
        %v1164 = vpop.f32.mrb[0].mxu0
        %v1165 = vadd.f32 %v1006, %v1164
        %v1166 = vpop.f32.mrb[0].mxu0
        %v1167 = vadd.f32 %v1006, %v1166
        %1168 = vmatprep.mubr.bf16.mxu0 0
        %1169 = vmatmul.mubr.bf16.gmra.mrb[0].mxu0 %v1102
        %v1170 = vpop.f32.mrb[0].mxu0
        %v1171 = vadd.f32 %v1011, %v1170
        %v1172 = vpop.f32.mrb[0].mxu0
        %v1173 = vadd.f32 %v1011, %v1172
        %v1174 = vpop.f32.mrb[0].mxu0
        %v1175 = vadd.f32 %v1016, %v1174
        %v1176 = vpop.f32.mrb[0].mxu0
        %v1177 = vadd.f32 %v1016, %v1176
        %1178 = vmatprep.mubr.bf16.mxu0 0
        %1179 = vmatmul.mubr.bf16.gmra.mrb[0].mxu0 %v1103
        %v1180 = vpop.f32.mrb[0].mxu0
        %v1181 = vadd.f32 %v1021, %v1180
        %v1182 = vpop.f32.mrb[0].mxu0
        %v1183 = vadd.f32 %v1021, %v1182
        %v1184 = vpop.f32.mrb[0].mxu0
        %v1185 = vadd.f32 %v1026, %v1184
        %v1186 = vpop.f32.mrb[0].mxu0
        %v1187 = vadd.f32 %v1026, %v1186
        %1188 = vmatprep.mubr.bf16.mxu0 0
        %1189 = vmatmul.mubr.bf16.gmra.mrb[0].mxu0 %v1104
        %v1190 = vpop.f32.mrb[0].mxu0
        %v1191 = vadd.f32 %v1031, %v1190
        %v1192 = vpop.f32.mrb[0].mxu0
        %v1193 = vadd.f32 %v1031, %v1192
        %v1194 = vpop.f32.mrb[0].mxu0
        %v1195 = vadd.f32 %v1036, %v1194
        %v1196 = vpop.f32.mrb[0].mxu0
        %v1197 = vadd.f32 %v1036, %v1196
        %1198 = vmatprep.mubr.bf16.mxu0 0
        %1199 = vmatmul.mubr.bf16.gmra.mrb[0].mxu0 %v1105
        %v1200 = vpop.f32.mrb[0].mxu0
        %v1201 = vadd.f32 %v1041, %v1200
        %v1202 = vpop.f32.mrb[0].mxu0
        %v1203 = vadd.f32 %v1041, %v1202
        %v1204 = vpop.f32.mrb[0].mxu0
        %v1205 = vadd.f32 %v1046, %v1204
        %v1206 = vpop.f32.mrb[0].mxu0
        %v1207 = vadd.f32 %v1046, %v1206
        %1208 = vmatprep.mubr.bf16.mxu0 0
        %1209 = vmatmul.mubr.bf16.gmra.mrb[0].mxu0 %v1106
        %v1210 = vpop.f32.mrb[0].mxu0
        %v1211 = vadd.f32 %v1051, %v1210
        %v1212 = vpop.f32.mrb[0].mxu0
        %v1213 = vadd.f32 %v1051, %v1212
        %v1214 = vpop.f32.mrb[0].mxu0
        %v1215 = vadd.f32 %v1056, %v1214
        %v1216 = vpop.f32.mrb[0].mxu0
        %v1217 = vadd.f32 %v1056, %v1216
        %1218 = vmatprep.mubr.bf16.mxu0 0
        %1219 = vmatmul.mubr.bf16.gmra.mrb[0].mxu0 %v1107
        %v1220 = vpop.f32.mrb[0].mxu0
        %v1221 = vadd.f32 %v1061, %v1220
        %v1222 = vpop.f32.mrb[0].mxu0
        %v1223 = vadd.f32 %v1061, %v1222
        %v1224 = vpop.f32.mrb[0].mxu0
        %v1225 = vadd.f32 %v1066, %v1224
        %v1226 = vpop.f32.mrb[0].mxu0
        %v1227 = vadd.f32 %v1066, %v1226
        %1228 = vdwg.mxu0
        %1229 = vmatprep.subr.bf16.mxu0 %v927
        %1230 = vmatpush1.bf16.msra.mxu0 %v926
        %1231 = vmatprep.subr.bf16.mxu0 %v931
        %1232 = vmatpush1.bf16.msra.mxu0 %v930
        %1233 = vmatprep.subr.bf16.mxu0 %v935
        %1234 = vmatpush1.bf16.msra.mxu0 %v934
        %1235 = vmatprep.subr.bf16.mxu0 %v939
        %1236 = vmatpush1.bf16.msra.mxu0 %v938
        %1237 = vmatprep.subr.bf16.mxu0 %v943
        %1238 = vmatpush1.bf16.msra.mxu0 %v942
        %1239 = vmatprep.subr.bf16.mxu0 %v947
        %1240 = vmatpush1.bf16.msra.mxu0 %v946
        %1241 = vmatprep.subr.bf16.mxu0 %v951
        %1242 = vmatpush1.bf16.msra.mxu0 %v950
        %1243 = vmatprep.subr.bf16.mxu0 %v955
        %1244 = vmatpush1.bf16.msra.mxu0 %v954
        %1245 = vmatprep.subr.bf16.mxu0 0
        %1246 = vmatpush1.bf16.msra.mxu0 0
        %1247 = vmatprep.subr.bf16.mxu0 0
        %1248 = vmatpush1.bf16.msra.mxu0 0
        %1249 = vmatprep.subr.bf16.mxu0 0
        %1250 = vmatpush1.bf16.msra.mxu0 0
        %1251 = vmatprep.subr.bf16.mxu0 0
        %1252 = vmatpush1.bf16.msra.mxu0 0
        %1253 = vmatprep.subr.bf16.mxu0 0
        %1254 = vmatpush1.bf16.msra.mxu0 0
        %1255 = vmatprep.subr.bf16.mxu0 0
        %1256 = vmatpush1.bf16.msra.mxu0 0
        %1257 = vmatprep.subr.bf16.mxu0 0
        %1258 = vmatpush1.bf16.msra.mxu0 0
        %1259 = vmatprep.subr.bf16.mxu0 0
        %1260 = vmatpush1.bf16.msra.mxu0 0
        %1261 = vmatprep.mubr.bf16.mxu0 0
        %1262 = vmatmul.mubr.bf16.gmra.mrb[0].mxu0 %v1100
        %v1263 = vpop.f32.mrb[0].mxu0
        %v1264 = vadd.f32 %v991, %v1263
        %v1265 = vpop.f32.mrb[0].mxu0
        %v1266 = vadd.f32 %v991, %v1265
        %v1267 = vpop.f32.mrb[0].mxu0
        %v1268 = vadd.f32 %v996, %v1267
        %v1269 = vpop.f32.mrb[0].mxu0
        %v1270 = vadd.f32 %v996, %v1269
        %1271 = vmatprep.mubr.bf16.mxu0 0
        %1272 = vmatmul.mubr.bf16.gmra.mrb[0].mxu0 %v1101
        %v1273 = vpop.f32.mrb[0].mxu0
        %v1274 = vadd.f32 %v1001, %v1273
        %v1275 = vpop.f32.mrb[0].mxu0
        %v1276 = vadd.f32 %v1001, %v1275
        %v1277 = vpop.f32.mrb[0].mxu0
        %v1278 = vadd.f32 %v1006, %v1277
        %v1279 = vpop.f32.mrb[0].mxu0
        %v1280 = vadd.f32 %v1006, %v1279
        %1281 = vmatprep.mubr.bf16.mxu0 0
        %1282 = vmatmul.mubr.bf16.gmra.mrb[0].mxu0 %v1102
        %v1283 = vpop.f32.mrb[0].mxu0
        %v1284 = vadd.f32 %v1011, %v1283
        %v1285 = vpop.f32.mrb[0].mxu0
        %v1286 = vadd.f32 %v1011, %v1285
        %v1287 = vpop.f32.mrb[0].mxu0
        %v1288 = vadd.f32 %v1016, %v1287
        %v1289 = vpop.f32.mrb[0].mxu0
        %v1290 = vadd.f32 %v1016, %v1289
        %1291 = vmatprep.mubr.bf16.mxu0 0
        %1292 = vmatmul.mubr.bf16.gmra.mrb[0].mxu0 %v1103
        %v1293 = vpop.f32.mrb[0].mxu0
        %v1294 = vadd.f32 %v1021, %v1293
        %v1295 = vpop.f32.mrb[0].mxu0
        %v1296 = vadd.f32 %v1021, %v1295
        %v1297 = vpop.f32.mrb[0].mxu0
        %v1298 = vadd.f32 %v1026, %v1297
        %v1299 = vpop.f32.mrb[0].mxu0
        %v1300 = vadd.f32 %v1026, %v1299
        %1301 = vmatprep.mubr.bf16.mxu0 0
        %1302 = vmatmul.mubr.bf16.gmra.mrb[0].mxu0 %v1104
        %v1303 = vpop.f32.mrb[0].mxu0
        %v1304 = vadd.f32 %v1031, %v1303
        %v1305 = vpop.f32.mrb[0].mxu0
        %v1306 = vadd.f32 %v1031, %v1305
        %v1307 = vpop.f32.mrb[0].mxu0
        %v1308 = vadd.f32 %v1036, %v1307
        %v1309 = vpop.f32.mrb[0].mxu0
        %v1310 = vadd.f32 %v1036, %v1309
        %1311 = vmatprep.mubr.bf16.mxu0 0
        %1312 = vmatmul.mubr.bf16.gmra.mrb[0].mxu0 %v1105
        %v1313 = vpop.f32.mrb[0].mxu0
        %v1314 = vadd.f32 %v1041, %v1313
        %v1315 = vpop.f32.mrb[0].mxu0
        %v1316 = vadd.f32 %v1041, %v1315
        %v1317 = vpop.f32.mrb[0].mxu0
        %v1318 = vadd.f32 %v1046, %v1317
        %v1319 = vpop.f32.mrb[0].mxu0
        %v1320 = vadd.f32 %v1046, %v1319
        %1321 = vmatprep.mubr.bf16.mxu0 0
        %1322 = vmatmul.mubr.bf16.gmra.mrb[0].mxu0 %v1106
        %v1323 = vpop.f32.mrb[0].mxu0
        %v1324 = vadd.f32 %v1051, %v1323
        %v1325 = vpop.f32.mrb[0].mxu0
        %v1326 = vadd.f32 %v1051, %v1325
        %v1327 = vpop.f32.mrb[0].mxu0
        %v1328 = vadd.f32 %v1056, %v1327
        %v1329 = vpop.f32.mrb[0].mxu0
        %v1330 = vadd.f32 %v1056, %v1329
        %1331 = vmatprep.mubr.bf16.mxu0 0
        %1332 = vmatmul.mubr.bf16.gmra.mrb[0].mxu0 %v1107
        %v1333 = vpop.f32.mrb[0].mxu0
        %v1334 = vadd.f32 %v1061, %v1333
        %v1335 = vpop.f32.mrb[0].mxu0
        %v1336 = vadd.f32 %v1061, %v1335
        %v1337 = vpop.f32.mrb[0].mxu0
        %v1338 = vadd.f32 %v1066, %v1337
        %v1339 = vpop.f32.mrb[0].mxu0
        %v1340 = vadd.f32 %v1066, %v1339
        %1341 = vdwg.mxu0
        %v1342 = vmax.f32 %v1151, 0.0
        %v1343 = vmax.f32 %v1153, 0.0
        %v1344 = vmax.f32 %v1264, 0.0
        %v1345 = vmax.f32 %v1266, 0.0
        %v1346 = vmax.f32 %v1155, 0.0
        %v1347 = vmax.f32 %v1157, 0.0
        %v1348 = vmax.f32 %v1268, 0.0
        %v1349 = vmax.f32 %v1270, 0.0
        %v1350 = vmax.f32 %v1161, 0.0
        %v1351 = vmax.f32 %v1163, 0.0
        %v1352 = vmax.f32 %v1274, 0.0
        %v1353 = vmax.f32 %v1276, 0.0
        %v1354 = vmax.f32 %v1165, 0.0
        %v1355 = vmax.f32 %v1167, 0.0
        %v1356 = vmax.f32 %v1278, 0.0
        %v1357 = vmax.f32 %v1280, 0.0
        %v1358 = vmax.f32 %v1171, 0.0
        %v1359 = vmax.f32 %v1173, 0.0
        %v1360 = vmax.f32 %v1284, 0.0
        %v1361 = vmax.f32 %v1286, 0.0
        %v1362 = vmax.f32 %v1175, 0.0
        %v1363 = vmax.f32 %v1177, 0.0
        %v1364 = vmax.f32 %v1288, 0.0
        %v1365 = vmax.f32 %v1290, 0.0
        %v1366 = vmax.f32 %v1181, 0.0
        %v1367 = vmax.f32 %v1183, 0.0
        %v1368 = vmax.f32 %v1294, 0.0
        %v1369 = vmax.f32 %v1296, 0.0
        %v1370 = vmax.f32 %v1185, 0.0
        %v1371 = vmax.f32 %v1187, 0.0
        %v1372 = vmax.f32 %v1298, 0.0
        %v1373 = vmax.f32 %v1300, 0.0
        %v1374 = vmax.f32 %v1191, 0.0
        %v1375 = vmax.f32 %v1193, 0.0
        %v1376 = vmax.f32 %v1304, 0.0
        %v1377 = vmax.f32 %v1306, 0.0
        %v1378 = vmax.f32 %v1195, 0.0
        %v1379 = vmax.f32 %v1197, 0.0
        %v1380 = vmax.f32 %v1308, 0.0
        %v1381 = vmax.f32 %v1310, 0.0
        %v1382 = vmax.f32 %v1201, 0.0
        %v1383 = vmax.f32 %v1203, 0.0
        %v1384 = vmax.f32 %v1314, 0.0
        %v1385 = vmax.f32 %v1316, 0.0
        %v1386 = vmax.f32 %v1205, 0.0
        %v1387 = vmax.f32 %v1207, 0.0
        %v1388 = vmax.f32 %v1318, 0.0
        %v1389 = vmax.f32 %v1320, 0.0
        %v1390 = vmax.f32 %v1211, 0.0
        %v1391 = vmax.f32 %v1213, 0.0
        %v1392 = vmax.f32 %v1324, 0.0
        %v1393 = vmax.f32 %v1326, 0.0
        %v1394 = vmax.f32 %v1215, 0.0
        %v1395 = vmax.f32 %v1217, 0.0
        %v1396 = vmax.f32 %v1328, 0.0
        %v1397 = vmax.f32 %v1330, 0.0
        %v1398 = vmax.f32 %v1221, 0.0
        %v1399 = vmax.f32 %v1223, 0.0
        %v1400 = vmax.f32 %v1334, 0.0
        %v1401 = vmax.f32 %v1336, 0.0
        %v1402 = vmax.f32 %v1225, 0.0
        %v1403 = vmax.f32 %v1227, 0.0
        %v1404 = vmax.f32 %v1338, 0.0
        %v1405 = vmax.f32 %v1340, 0.0
        %v1406 = vpack.c.bf16 %v1346, %v1342
        %v1407 = vpack.c.bf16 %v1347, %v1343
        %v1408 = vpack.c.bf16 %v1348, %v1344
        %v1409 = vpack.c.bf16 %v1349, %v1345
        %v1410 = vpack.c.bf16 %v1354, %v1350
        %v1411 = vpack.c.bf16 %v1355, %v1351
        %v1412 = vpack.c.bf16 %v1356, %v1352
        %v1413 = vpack.c.bf16 %v1357, %v1353
        %v1414 = vpack.c.bf16 %v1362, %v1358
        %v1415 = vpack.c.bf16 %v1363, %v1359
        %v1416 = vpack.c.bf16 %v1364, %v1360
        %v1417 = vpack.c.bf16 %v1365, %v1361
        %v1418 = vpack.c.bf16 %v1370, %v1366
        %v1419 = vpack.c.bf16 %v1371, %v1367
        %v1420 = vpack.c.bf16 %v1372, %v1368
        %v1421 = vpack.c.bf16 %v1373, %v1369
        %v1422 = vpack.c.bf16 %v1378, %v1374
        %v1423 = vpack.c.bf16 %v1379, %v1375
        %v1424 = vpack.c.bf16 %v1380, %v1376
        %v1425 = vpack.c.bf16 %v1381, %v1377
        %v1426 = vpack.c.bf16 %v1386, %v1382
        %v1427 = vpack.c.bf16 %v1387, %v1383
        %v1428 = vpack.c.bf16 %v1388, %v1384
        %v1429 = vpack.c.bf16 %v1389, %v1385
        %v1430 = vpack.c.bf16 %v1394, %v1390
        %v1431 = vpack.c.bf16 %v1395, %v1391
        %v1432 = vpack.c.bf16 %v1396, %v1392
        %v1433 = vpack.c.bf16 %v1397, %v1393
        %v1434 = vpack.c.bf16 %v1402, %v1398
        %v1435 = vpack.c.bf16 %v1403, %v1399
        %v1436 = vpack.c.bf16 %v1404, %v1400
        %v1437 = vpack.c.bf16 %v1405, %v1401
        %v1438 = vld [vmem:[%s5] sm:$0xf]
        %v1439 = vld [vmem:[%s5 + $0x4] sm:$0xf]
        %v1440 = vld [vmem:[%s5 + $0x8] sm:$0xf]
        %v1441 = vld [vmem:[%s5 + $0xc] sm:$0xf]
        %v1442 = vld [vmem:[%s5 + $0x10] sm:$0xf]
        %v1443 = vld [vmem:[%s5 + $0x14] sm:$0xf]
        %v1444 = vld [vmem:[%s5 + $0x18] sm:$0xf]
        %v1445 = vld [vmem:[%s5 + $0x1c] sm:$0xf]
        %v1446 = vld [vmem:[%s5 + $0x20] sm:$0xf]
        %v1447 = vld [vmem:[%s5 + $0x24] sm:$0xf]
        %v1448 = vld [vmem:[%s5 + $0x28] sm:$0xf]
        %v1449 = vld [vmem:[%s5 + $0x2c] sm:$0xf]
        %v1450 = vld [vmem:[%s5 + $0x30] sm:$0xf]
        %v1451 = vld [vmem:[%s5 + $0x34] sm:$0xf]
        %v1452 = vld [vmem:[%s5 + $0x38] sm:$0xf]
        %v1453 = vld [vmem:[%s5 + $0x3c] sm:$0xf]
        %v1454 = vld [vmem:[%s6] sm:$0xff]
        %v1455 = vld [vmem:[%s6 + $0x8] sm:$0xff]
        %v1456 = vld [vmem:[%s6 + $0x10] sm:$0xff]
        %v1457 = vld [vmem:[%s6 + $0x18] sm:$0xff]
        %v1458 = vld [vmem:[%s6 + $0x20] sm:$0xff]
        %v1459 = vld [vmem:[%s6 + $0x28] sm:$0xff]
        %v1460 = vld [vmem:[%s6 + $0x30] sm:$0xff]
        %v1461 = vld [vmem:[%s6 + $0x38] sm:$0xff]
        %v1462 = vld [vmem:[%s6 + $0x40] sm:$0xff]
        %v1463 = vld [vmem:[%s6 + $0x48] sm:$0xff]
        %v1464 = vld [vmem:[%s6 + $0x50] sm:$0xff]
        %v1465 = vld [vmem:[%s6 + $0x58] sm:$0xff]
        %v1466 = vld [vmem:[%s6 + $0x60] sm:$0xff]
        %v1467 = vld [vmem:[%s6 + $0x68] sm:$0xff]
        %v1468 = vld [vmem:[%s6 + $0x70] sm:$0xff]
        %v1469 = vld [vmem:[%s6 + $0x78] sm:$0xff]
        %1471 = vset.pattern.permute.xlu0 0
        %1472 = vperm.xlu0 %1471, %v1454
        %v1473 = vpop.permute.xlu0 %1472
        %1476 = vset.pattern.permute.xlu0 0
        %1477 = vperm.xlu0 %1476, %v1455
        %v1478 = vpop.permute.xlu0 %1477
        %1481 = vset.pattern.permute.xlu0 0
        %1482 = vperm.xlu0 %1481, %v1456
        %v1483 = vpop.permute.xlu0 %1482
        %1486 = vset.pattern.permute.xlu0 0
        %1487 = vperm.xlu0 %1486, %v1457
        %v1488 = vpop.permute.xlu0 %1487
        %1491 = vset.pattern.permute.xlu0 0
        %1492 = vperm.xlu0 %1491, %v1458
        %v1493 = vpop.permute.xlu0 %1492
        %1496 = vset.pattern.permute.xlu0 0
        %1497 = vperm.xlu0 %1496, %v1459
        %v1498 = vpop.permute.xlu0 %1497
        %1501 = vset.pattern.permute.xlu0 0
        %1502 = vperm.xlu0 %1501, %v1460
        %v1503 = vpop.permute.xlu0 %1502
        %1506 = vset.pattern.permute.xlu0 0
        %1507 = vperm.xlu0 %1506, %v1461
        %v1508 = vpop.permute.xlu0 %1507
        %1511 = vset.pattern.permute.xlu0 0
        %1512 = vperm.xlu0 %1511, %v1462
        %v1513 = vpop.permute.xlu0 %1512
        %1516 = vset.pattern.permute.xlu0 0
        %1517 = vperm.xlu0 %1516, %v1463
        %v1518 = vpop.permute.xlu0 %1517
        %1521 = vset.pattern.permute.xlu0 0
        %1522 = vperm.xlu0 %1521, %v1464
        %v1523 = vpop.permute.xlu0 %1522
        %1526 = vset.pattern.permute.xlu0 0
        %1527 = vperm.xlu0 %1526, %v1465
        %v1528 = vpop.permute.xlu0 %1527
        %1531 = vset.pattern.permute.xlu0 0
        %1532 = vperm.xlu0 %1531, %v1466
        %v1533 = vpop.permute.xlu0 %1532
        %1536 = vset.pattern.permute.xlu0 0
        %1537 = vperm.xlu0 %1536, %v1467
        %v1538 = vpop.permute.xlu0 %1537
        %1541 = vset.pattern.permute.xlu0 0
        %1542 = vperm.xlu0 %1541, %v1468
        %v1543 = vpop.permute.xlu0 %1542
        %1546 = vset.pattern.permute.xlu0 0
        %1547 = vperm.xlu0 %1546, %v1469
        %v1548 = vpop.permute.xlu0 %1547
        %v1566 = vunpack.c.l.b16 %v1438
        %v1567 = vunpack.c.l.b16 %v1439
        %v1568 = vunpack.c.l.b16 %v1440
        %v1569 = vunpack.c.l.b16 %v1441
        %v1570 = vunpack.c.l.b16 %v1442
        %v1571 = vunpack.c.l.b16 %v1443
        %v1572 = vunpack.c.l.b16 %v1444
        %v1573 = vunpack.c.l.b16 %v1445
        %v1574 = vunpack.c.l.b16 %v1446
        %v1575 = vunpack.c.l.b16 %v1447
        %v1576 = vunpack.c.l.b16 %v1448
        %v1577 = vunpack.c.l.b16 %v1449
        %v1578 = vunpack.c.l.b16 %v1450
        %v1579 = vunpack.c.l.b16 %v1451
        %v1580 = vunpack.c.l.b16 %v1452
        %v1581 = vunpack.c.l.b16 %v1453
        %v1582 = vpack.c.b16 %v1567, %v1566
        %v1583 = vpack.c.b16 %v1569, %v1568
        %v1584 = vpack.c.b16 %v1571, %v1570
        %v1585 = vpack.c.b16 %v1573, %v1572
        %v1586 = vpack.c.b16 %v1575, %v1574
        %v1587 = vpack.c.b16 %v1577, %v1576
        %v1588 = vpack.c.b16 %v1579, %v1578
        %v1589 = vpack.c.b16 %v1581, %v1580
        %1598 = vmatprep.subr.bf16.mxu0 %v1407
        %1599 = vmatpush1.bf16.msra.mxu0 %v1406
        %1600 = vmatprep.subr.bf16.mxu0 %v1411
        %1601 = vmatpush1.bf16.msra.mxu0 %v1410
        %1602 = vmatprep.subr.bf16.mxu0 %v1415
        %1603 = vmatpush1.bf16.msra.mxu0 %v1414
        %1604 = vmatprep.subr.bf16.mxu0 %v1419
        %1605 = vmatpush1.bf16.msra.mxu0 %v1418
        %1606 = vmatprep.subr.bf16.mxu0 %v1423
        %1607 = vmatpush1.bf16.msra.mxu0 %v1422
        %1608 = vmatprep.subr.bf16.mxu0 %v1427
        %1609 = vmatpush1.bf16.msra.mxu0 %v1426
        %1610 = vmatprep.subr.bf16.mxu0 %v1431
        %1611 = vmatpush1.bf16.msra.mxu0 %v1430
        %1612 = vmatprep.subr.bf16.mxu0 %v1435
        %1613 = vmatpush1.bf16.msra.mxu0 %v1434
        %1614 = vmatprep.subr.bf16.mxu0 0
        %1615 = vmatpush1.bf16.msra.mxu0 0
        %1616 = vmatprep.subr.bf16.mxu0 0
        %1617 = vmatpush1.bf16.msra.mxu0 0
        %1618 = vmatprep.subr.bf16.mxu0 0
        %1619 = vmatpush1.bf16.msra.mxu0 0
        %1620 = vmatprep.subr.bf16.mxu0 0
        %1621 = vmatpush1.bf16.msra.mxu0 0
        %1622 = vmatprep.subr.bf16.mxu0 0
        %1623 = vmatpush1.bf16.msra.mxu0 0
        %1624 = vmatprep.subr.bf16.mxu0 0
        %1625 = vmatpush1.bf16.msra.mxu0 0
        %1626 = vmatprep.subr.bf16.mxu0 0
        %1627 = vmatpush1.bf16.msra.mxu0 0
        %1628 = vmatprep.subr.bf16.mxu0 0
        %1629 = vmatpush1.bf16.msra.mxu0 0
        %1630 = vmatprep.mubr.bf16.mxu0 0
        %1631 = vmatmul.mubr.bf16.gmra.mrb[0].mxu0 %v1582
        %v1632 = vpop.f32.mrb[0].mxu0
        %v1633 = vadd.f32 %v1473, %v1632
        %v1634 = vpop.f32.mrb[0].mxu0
        %v1635 = vadd.f32 %v1473, %v1634
        %v1636 = vpop.f32.mrb[0].mxu0
        %v1637 = vadd.f32 %v1478, %v1636
        %v1638 = vpop.f32.mrb[0].mxu0
        %v1639 = vadd.f32 %v1478, %v1638
        %1640 = vmatprep.mubr.bf16.mxu0 0
        %1641 = vmatmul.mubr.bf16.gmra.mrb[0].mxu0 %v1583
        %v1642 = vpop.f32.mrb[0].mxu0
        %v1643 = vadd.f32 %v1483, %v1642
        %v1644 = vpop.f32.mrb[0].mxu0
        %v1645 = vadd.f32 %v1483, %v1644
        %v1646 = vpop.f32.mrb[0].mxu0
        %v1647 = vadd.f32 %v1488, %v1646
        %v1648 = vpop.f32.mrb[0].mxu0
        %v1649 = vadd.f32 %v1488, %v1648
        %1650 = vmatprep.mubr.bf16.mxu0 0
        %1651 = vmatmul.mubr.bf16.gmra.mrb[0].mxu0 %v1584
        %v1652 = vpop.f32.mrb[0].mxu0
        %v1653 = vadd.f32 %v1493, %v1652
        %v1654 = vpop.f32.mrb[0].mxu0
        %v1655 = vadd.f32 %v1493, %v1654
        %v1656 = vpop.f32.mrb[0].mxu0
        %v1657 = vadd.f32 %v1498, %v1656
        %v1658 = vpop.f32.mrb[0].mxu0
        %v1659 = vadd.f32 %v1498, %v1658
        %1660 = vmatprep.mubr.bf16.mxu0 0
        %1661 = vmatmul.mubr.bf16.gmra.mrb[0].mxu0 %v1585
        %v1662 = vpop.f32.mrb[0].mxu0
        %v1663 = vadd.f32 %v1503, %v1662
        %v1664 = vpop.f32.mrb[0].mxu0
        %v1665 = vadd.f32 %v1503, %v1664
        %v1666 = vpop.f32.mrb[0].mxu0
        %v1667 = vadd.f32 %v1508, %v1666
        %v1668 = vpop.f32.mrb[0].mxu0
        %v1669 = vadd.f32 %v1508, %v1668
        %1670 = vmatprep.mubr.bf16.mxu0 0
        %1671 = vmatmul.mubr.bf16.gmra.mrb[0].mxu0 %v1586
        %v1672 = vpop.f32.mrb[0].mxu0
        %v1673 = vadd.f32 %v1513, %v1672
        %v1674 = vpop.f32.mrb[0].mxu0
        %v1675 = vadd.f32 %v1513, %v1674
        %v1676 = vpop.f32.mrb[0].mxu0
        %v1677 = vadd.f32 %v1518, %v1676
        %v1678 = vpop.f32.mrb[0].mxu0
        %v1679 = vadd.f32 %v1518, %v1678
        %1680 = vmatprep.mubr.bf16.mxu0 0
        %1681 = vmatmul.mubr.bf16.gmra.mrb[0].mxu0 %v1587
        %v1682 = vpop.f32.mrb[0].mxu0
        %v1683 = vadd.f32 %v1523, %v1682
        %v1684 = vpop.f32.mrb[0].mxu0
        %v1685 = vadd.f32 %v1523, %v1684
        %v1686 = vpop.f32.mrb[0].mxu0
        %v1687 = vadd.f32 %v1528, %v1686
        %v1688 = vpop.f32.mrb[0].mxu0
        %v1689 = vadd.f32 %v1528, %v1688
        %1690 = vmatprep.mubr.bf16.mxu0 0
        %1691 = vmatmul.mubr.bf16.gmra.mrb[0].mxu0 %v1588
        %v1692 = vpop.f32.mrb[0].mxu0
        %v1693 = vadd.f32 %v1533, %v1692
        %v1694 = vpop.f32.mrb[0].mxu0
        %v1695 = vadd.f32 %v1533, %v1694
        %v1696 = vpop.f32.mrb[0].mxu0
        %v1697 = vadd.f32 %v1538, %v1696
        %v1698 = vpop.f32.mrb[0].mxu0
        %v1699 = vadd.f32 %v1538, %v1698
        %1700 = vmatprep.mubr.bf16.mxu0 0
        %1701 = vmatmul.mubr.bf16.gmra.mrb[0].mxu0 %v1589
        %v1702 = vpop.f32.mrb[0].mxu0
        %v1703 = vadd.f32 %v1543, %v1702
        %v1704 = vpop.f32.mrb[0].mxu0
        %v1705 = vadd.f32 %v1543, %v1704
        %v1706 = vpop.f32.mrb[0].mxu0
        %v1707 = vadd.f32 %v1548, %v1706
        %v1708 = vpop.f32.mrb[0].mxu0
        %v1709 = vadd.f32 %v1548, %v1708
        %1710 = vdwg.mxu0
        %1711 = vmatprep.subr.bf16.mxu0 %v1409
        %1712 = vmatpush1.bf16.msra.mxu0 %v1408
        %1713 = vmatprep.subr.bf16.mxu0 %v1413
        %1714 = vmatpush1.bf16.msra.mxu0 %v1412
        %1715 = vmatprep.subr.bf16.mxu0 %v1417
        %1716 = vmatpush1.bf16.msra.mxu0 %v1416
        %1717 = vmatprep.subr.bf16.mxu0 %v1421
        %1718 = vmatpush1.bf16.msra.mxu0 %v1420
        %1719 = vmatprep.subr.bf16.mxu0 %v1425
        %1720 = vmatpush1.bf16.msra.mxu0 %v1424
        %1721 = vmatprep.subr.bf16.mxu0 %v1429
        %1722 = vmatpush1.bf16.msra.mxu0 %v1428
        %1723 = vmatprep.subr.bf16.mxu0 %v1433
        %1724 = vmatpush1.bf16.msra.mxu0 %v1432
        %1725 = vmatprep.subr.bf16.mxu0 %v1437
        %1726 = vmatpush1.bf16.msra.mxu0 %v1436
        %1727 = vmatprep.subr.bf16.mxu0 0
        %1728 = vmatpush1.bf16.msra.mxu0 0
        %1729 = vmatprep.subr.bf16.mxu0 0
        %1730 = vmatpush1.bf16.msra.mxu0 0
        %1731 = vmatprep.subr.bf16.mxu0 0
        %1732 = vmatpush1.bf16.msra.mxu0 0
        %1733 = vmatprep.subr.bf16.mxu0 0
        %1734 = vmatpush1.bf16.msra.mxu0 0
        %1735 = vmatprep.subr.bf16.mxu0 0
        %1736 = vmatpush1.bf16.msra.mxu0 0
        %1737 = vmatprep.subr.bf16.mxu0 0
        %1738 = vmatpush1.bf16.msra.mxu0 0
        %1739 = vmatprep.subr.bf16.mxu0 0
        %1740 = vmatpush1.bf16.msra.mxu0 0
        %1741 = vmatprep.subr.bf16.mxu0 0
        %1742 = vmatpush1.bf16.msra.mxu0 0
        %1743 = vmatprep.mubr.bf16.mxu0 0
        %1744 = vmatmul.mubr.bf16.gmra.mrb[0].mxu0 %v1582
        %v1745 = vpop.f32.mrb[0].mxu0
        %v1746 = vadd.f32 %v1473, %v1745
        %v1747 = vpop.f32.mrb[0].mxu0
        %v1748 = vadd.f32 %v1473, %v1747
        %v1749 = vpop.f32.mrb[0].mxu0
        %v1750 = vadd.f32 %v1478, %v1749
        %v1751 = vpop.f32.mrb[0].mxu0
        %v1752 = vadd.f32 %v1478, %v1751
        %1753 = vmatprep.mubr.bf16.mxu0 0
        %1754 = vmatmul.mubr.bf16.gmra.mrb[0].mxu0 %v1583
        %v1755 = vpop.f32.mrb[0].mxu0
        %v1756 = vadd.f32 %v1483, %v1755
        %v1757 = vpop.f32.mrb[0].mxu0
        %v1758 = vadd.f32 %v1483, %v1757
        %v1759 = vpop.f32.mrb[0].mxu0
        %v1760 = vadd.f32 %v1488, %v1759
        %v1761 = vpop.f32.mrb[0].mxu0
        %v1762 = vadd.f32 %v1488, %v1761
        %1763 = vmatprep.mubr.bf16.mxu0 0
        %1764 = vmatmul.mubr.bf16.gmra.mrb[0].mxu0 %v1584
        %v1765 = vpop.f32.mrb[0].mxu0
        %v1766 = vadd.f32 %v1493, %v1765
        %v1767 = vpop.f32.mrb[0].mxu0
        %v1768 = vadd.f32 %v1493, %v1767
        %v1769 = vpop.f32.mrb[0].mxu0
        %v1770 = vadd.f32 %v1498, %v1769
        %v1771 = vpop.f32.mrb[0].mxu0
        %v1772 = vadd.f32 %v1498, %v1771
        %1773 = vmatprep.mubr.bf16.mxu0 0
        %1774 = vmatmul.mubr.bf16.gmra.mrb[0].mxu0 %v1585
        %v1775 = vpop.f32.mrb[0].mxu0
        %v1776 = vadd.f32 %v1503, %v1775
        %v1777 = vpop.f32.mrb[0].mxu0
        %v1778 = vadd.f32 %v1503, %v1777
        %v1779 = vpop.f32.mrb[0].mxu0
        %v1780 = vadd.f32 %v1508, %v1779
        %v1781 = vpop.f32.mrb[0].mxu0
        %v1782 = vadd.f32 %v1508, %v1781
        %1783 = vmatprep.mubr.bf16.mxu0 0
        %1784 = vmatmul.mubr.bf16.gmra.mrb[0].mxu0 %v1586
        %v1785 = vpop.f32.mrb[0].mxu0
        %v1786 = vadd.f32 %v1513, %v1785
        %v1787 = vpop.f32.mrb[0].mxu0
        %v1788 = vadd.f32 %v1513, %v1787
        %v1789 = vpop.f32.mrb[0].mxu0
        %v1790 = vadd.f32 %v1518, %v1789
        %v1791 = vpop.f32.mrb[0].mxu0
        %v1792 = vadd.f32 %v1518, %v1791
        %1793 = vmatprep.mubr.bf16.mxu0 0
        %1794 = vmatmul.mubr.bf16.gmra.mrb[0].mxu0 %v1587
        %v1795 = vpop.f32.mrb[0].mxu0
        %v1796 = vadd.f32 %v1523, %v1795
        %v1797 = vpop.f32.mrb[0].mxu0
        %v1798 = vadd.f32 %v1523, %v1797
        %v1799 = vpop.f32.mrb[0].mxu0
        %v1800 = vadd.f32 %v1528, %v1799
        %v1801 = vpop.f32.mrb[0].mxu0
        %v1802 = vadd.f32 %v1528, %v1801
        %1803 = vmatprep.mubr.bf16.mxu0 0
        %1804 = vmatmul.mubr.bf16.gmra.mrb[0].mxu0 %v1588
        %v1805 = vpop.f32.mrb[0].mxu0
        %v1806 = vadd.f32 %v1533, %v1805
        %v1807 = vpop.f32.mrb[0].mxu0
        %v1808 = vadd.f32 %v1533, %v1807
        %v1809 = vpop.f32.mrb[0].mxu0
        %v1810 = vadd.f32 %v1538, %v1809
        %v1811 = vpop.f32.mrb[0].mxu0
        %v1812 = vadd.f32 %v1538, %v1811
        %1813 = vmatprep.mubr.bf16.mxu0 0
        %1814 = vmatmul.mubr.bf16.gmra.mrb[0].mxu0 %v1589
        %v1815 = vpop.f32.mrb[0].mxu0
        %v1816 = vadd.f32 %v1543, %v1815
        %v1817 = vpop.f32.mrb[0].mxu0
        %v1818 = vadd.f32 %v1543, %v1817
        %v1819 = vpop.f32.mrb[0].mxu0
        %v1820 = vadd.f32 %v1548, %v1819
        %v1821 = vpop.f32.mrb[0].mxu0
        %v1822 = vadd.f32 %v1548, %v1821
        %1823 = vdwg.mxu0
        %v1824 = vmax.f32 %v1633, 0.0
        %v1825 = vmax.f32 %v1635, 0.0
        %v1826 = vmax.f32 %v1746, 0.0
        %v1827 = vmax.f32 %v1748, 0.0
        %v1828 = vmax.f32 %v1637, 0.0
        %v1829 = vmax.f32 %v1639, 0.0
        %v1830 = vmax.f32 %v1750, 0.0
        %v1831 = vmax.f32 %v1752, 0.0
        %v1832 = vmax.f32 %v1643, 0.0
        %v1833 = vmax.f32 %v1645, 0.0
        %v1834 = vmax.f32 %v1756, 0.0
        %v1835 = vmax.f32 %v1758, 0.0
        %v1836 = vmax.f32 %v1647, 0.0
        %v1837 = vmax.f32 %v1649, 0.0
        %v1838 = vmax.f32 %v1760, 0.0
        %v1839 = vmax.f32 %v1762, 0.0
        %v1840 = vmax.f32 %v1653, 0.0
        %v1841 = vmax.f32 %v1655, 0.0
        %v1842 = vmax.f32 %v1766, 0.0
        %v1843 = vmax.f32 %v1768, 0.0
        %v1844 = vmax.f32 %v1657, 0.0
        %v1845 = vmax.f32 %v1659, 0.0
        %v1846 = vmax.f32 %v1770, 0.0
        %v1847 = vmax.f32 %v1772, 0.0
        %v1848 = vmax.f32 %v1663, 0.0
        %v1849 = vmax.f32 %v1665, 0.0
        %v1850 = vmax.f32 %v1776, 0.0
        %v1851 = vmax.f32 %v1778, 0.0
        %v1852 = vmax.f32 %v1667, 0.0
        %v1853 = vmax.f32 %v1669, 0.0
        %v1854 = vmax.f32 %v1780, 0.0
        %v1855 = vmax.f32 %v1782, 0.0
        %v1856 = vmax.f32 %v1673, 0.0
        %v1857 = vmax.f32 %v1675, 0.0
        %v1858 = vmax.f32 %v1786, 0.0
        %v1859 = vmax.f32 %v1788, 0.0
        %v1860 = vmax.f32 %v1677, 0.0
        %v1861 = vmax.f32 %v1679, 0.0
        %v1862 = vmax.f32 %v1790, 0.0
        %v1863 = vmax.f32 %v1792, 0.0
        %v1864 = vmax.f32 %v1683, 0.0
        %v1865 = vmax.f32 %v1685, 0.0
        %v1866 = vmax.f32 %v1796, 0.0
        %v1867 = vmax.f32 %v1798, 0.0
        %v1868 = vmax.f32 %v1687, 0.0
        %v1869 = vmax.f32 %v1689, 0.0
        %v1870 = vmax.f32 %v1800, 0.0
        %v1871 = vmax.f32 %v1802, 0.0
        %v1872 = vmax.f32 %v1693, 0.0
        %v1873 = vmax.f32 %v1695, 0.0
        %v1874 = vmax.f32 %v1806, 0.0
        %v1875 = vmax.f32 %v1808, 0.0
        %v1876 = vmax.f32 %v1697, 0.0
        %v1877 = vmax.f32 %v1699, 0.0
        %v1878 = vmax.f32 %v1810, 0.0
        %v1879 = vmax.f32 %v1812, 0.0
        %v1880 = vmax.f32 %v1703, 0.0
        %v1881 = vmax.f32 %v1705, 0.0
        %v1882 = vmax.f32 %v1816, 0.0
        %v1883 = vmax.f32 %v1818, 0.0
        %v1884 = vmax.f32 %v1707, 0.0
        %v1885 = vmax.f32 %v1709, 0.0
        %v1886 = vmax.f32 %v1820, 0.0
        %v1887 = vmax.f32 %v1822, 0.0
        %v1888 = vpack.c.bf16 %v1828, %v1824
        %v1889 = vpack.c.bf16 %v1829, %v1825
        %v1890 = vpack.c.bf16 %v1830, %v1826
        %v1891 = vpack.c.bf16 %v1831, %v1827
        %v1892 = vpack.c.bf16 %v1836, %v1832
        %v1893 = vpack.c.bf16 %v1837, %v1833
        %v1894 = vpack.c.bf16 %v1838, %v1834
        %v1895 = vpack.c.bf16 %v1839, %v1835
        %v1896 = vpack.c.bf16 %v1844, %v1840
        %v1897 = vpack.c.bf16 %v1845, %v1841
        %v1898 = vpack.c.bf16 %v1846, %v1842
        %v1899 = vpack.c.bf16 %v1847, %v1843
        %v1900 = vpack.c.bf16 %v1852, %v1848
        %v1901 = vpack.c.bf16 %v1853, %v1849
        %v1902 = vpack.c.bf16 %v1854, %v1850
        %v1903 = vpack.c.bf16 %v1855, %v1851
        %v1904 = vpack.c.bf16 %v1860, %v1856
        %v1905 = vpack.c.bf16 %v1861, %v1857
        %v1906 = vpack.c.bf16 %v1862, %v1858
        %v1907 = vpack.c.bf16 %v1863, %v1859
        %v1908 = vpack.c.bf16 %v1868, %v1864
        %v1909 = vpack.c.bf16 %v1869, %v1865
        %v1910 = vpack.c.bf16 %v1870, %v1866
        %v1911 = vpack.c.bf16 %v1871, %v1867
        %v1912 = vpack.c.bf16 %v1876, %v1872
        %v1913 = vpack.c.bf16 %v1877, %v1873
        %v1914 = vpack.c.bf16 %v1878, %v1874
        %v1915 = vpack.c.bf16 %v1879, %v1875
        %v1916 = vpack.c.bf16 %v1884, %v1880
        %v1917 = vpack.c.bf16 %v1885, %v1881
        %v1918 = vpack.c.bf16 %v1886, %v1882
        %v1919 = vpack.c.bf16 %v1887, %v1883
        %v1920 = vld [vmem:[%s7] sm:$0xf]
        %v1921 = vld [vmem:[%s7 + $0x4] sm:$0xf]
        %v1922 = vld [vmem:[%s7 + $0x8] sm:$0xf]
        %v1923 = vld [vmem:[%s7 + $0xc] sm:$0xf]
        %v1924 = vld [vmem:[%s7 + $0x10] sm:$0xf]
        %v1925 = vld [vmem:[%s7 + $0x14] sm:$0xf]
        %v1926 = vld [vmem:[%s7 + $0x18] sm:$0xf]
        %v1927 = vld [vmem:[%s7 + $0x1c] sm:$0xf]
        %v1928 = vld [vmem:[%s7 + $0x20] sm:$0xf]
        %v1929 = vld [vmem:[%s7 + $0x24] sm:$0xf]
        %v1930 = vld [vmem:[%s7 + $0x28] sm:$0xf]
        %v1931 = vld [vmem:[%s7 + $0x2c] sm:$0xf]
        %v1932 = vld [vmem:[%s7 + $0x30] sm:$0xf]
        %v1933 = vld [vmem:[%s7 + $0x34] sm:$0xf]
        %v1934 = vld [vmem:[%s7 + $0x38] sm:$0xf]
        %v1935 = vld [vmem:[%s7 + $0x3c] sm:$0xf]
        %v1936 = vld [vmem:[%s8] sm:$0xff]
        %v1937 = vld [vmem:[%s8 + $0x8] sm:$0xff]
        %v1938 = vld [vmem:[%s8 + $0x10] sm:$0xff]
        %v1939 = vld [vmem:[%s8 + $0x18] sm:$0xff]
        %v1940 = vld [vmem:[%s8 + $0x20] sm:$0xff]
        %v1941 = vld [vmem:[%s8 + $0x28] sm:$0xff]
        %v1942 = vld [vmem:[%s8 + $0x30] sm:$0xff]
        %v1943 = vld [vmem:[%s8 + $0x38] sm:$0xff]
        %v1944 = vld [vmem:[%s8 + $0x40] sm:$0xff]
        %v1945 = vld [vmem:[%s8 + $0x48] sm:$0xff]
        %v1946 = vld [vmem:[%s8 + $0x50] sm:$0xff]
        %v1947 = vld [vmem:[%s8 + $0x58] sm:$0xff]
        %v1948 = vld [vmem:[%s8 + $0x60] sm:$0xff]
        %v1949 = vld [vmem:[%s8 + $0x68] sm:$0xff]
        %v1950 = vld [vmem:[%s8 + $0x70] sm:$0xff]
        %v1951 = vld [vmem:[%s8 + $0x78] sm:$0xff]
        %1953 = vset.pattern.permute.xlu0 0
        %1954 = vperm.xlu0 %1953, %v1936
        %v1955 = vpop.permute.xlu0 %1954
        %1958 = vset.pattern.permute.xlu0 0
        %1959 = vperm.xlu0 %1958, %v1937
        %v1960 = vpop.permute.xlu0 %1959
        %1963 = vset.pattern.permute.xlu0 0
        %1964 = vperm.xlu0 %1963, %v1938
        %v1965 = vpop.permute.xlu0 %1964
        %1968 = vset.pattern.permute.xlu0 0
        %1969 = vperm.xlu0 %1968, %v1939
        %v1970 = vpop.permute.xlu0 %1969
        %1973 = vset.pattern.permute.xlu0 0
        %1974 = vperm.xlu0 %1973, %v1940
        %v1975 = vpop.permute.xlu0 %1974
        %1978 = vset.pattern.permute.xlu0 0
        %1979 = vperm.xlu0 %1978, %v1941
        %v1980 = vpop.permute.xlu0 %1979
        %1983 = vset.pattern.permute.xlu0 0
        %1984 = vperm.xlu0 %1983, %v1942
        %v1985 = vpop.permute.xlu0 %1984
        %1988 = vset.pattern.permute.xlu0 0
        %1989 = vperm.xlu0 %1988, %v1943
        %v1990 = vpop.permute.xlu0 %1989
        %1993 = vset.pattern.permute.xlu0 0
        %1994 = vperm.xlu0 %1993, %v1944
        %v1995 = vpop.permute.xlu0 %1994
        %1998 = vset.pattern.permute.xlu0 0
        %1999 = vperm.xlu0 %1998, %v1945
        %v2000 = vpop.permute.xlu0 %1999
        %2003 = vset.pattern.permute.xlu0 0
        %2004 = vperm.xlu0 %2003, %v1946
        %v2005 = vpop.permute.xlu0 %2004
        %2008 = vset.pattern.permute.xlu0 0
        %2009 = vperm.xlu0 %2008, %v1947
        %v2010 = vpop.permute.xlu0 %2009
        %2013 = vset.pattern.permute.xlu0 0
        %2014 = vperm.xlu0 %2013, %v1948
        %v2015 = vpop.permute.xlu0 %2014
        %2018 = vset.pattern.permute.xlu0 0
        %2019 = vperm.xlu0 %2018, %v1949
        %v2020 = vpop.permute.xlu0 %2019
        %2023 = vset.pattern.permute.xlu0 0
        %2024 = vperm.xlu0 %2023, %v1950
        %v2025 = vpop.permute.xlu0 %2024
        %2028 = vset.pattern.permute.xlu0 0
        %2029 = vperm.xlu0 %2028, %v1951
        %v2030 = vpop.permute.xlu0 %2029
        %v2048 = vunpack.c.l.b16 %v1920
        %v2049 = vunpack.c.l.b16 %v1921
        %v2050 = vunpack.c.l.b16 %v1922
        %v2051 = vunpack.c.l.b16 %v1923
        %v2052 = vunpack.c.l.b16 %v1924
        %v2053 = vunpack.c.l.b16 %v1925
        %v2054 = vunpack.c.l.b16 %v1926
        %v2055 = vunpack.c.l.b16 %v1927
        %v2056 = vunpack.c.l.b16 %v1928
        %v2057 = vunpack.c.l.b16 %v1929
        %v2058 = vunpack.c.l.b16 %v1930
        %v2059 = vunpack.c.l.b16 %v1931
        %v2060 = vunpack.c.l.b16 %v1932
        %v2061 = vunpack.c.l.b16 %v1933
        %v2062 = vunpack.c.l.b16 %v1934
        %v2063 = vunpack.c.l.b16 %v1935
        %v2064 = vpack.c.b16 %v2049, %v2048
        %v2065 = vpack.c.b16 %v2051, %v2050
        %v2066 = vpack.c.b16 %v2053, %v2052
        %v2067 = vpack.c.b16 %v2055, %v2054
        %v2068 = vpack.c.b16 %v2057, %v2056
        %v2069 = vpack.c.b16 %v2059, %v2058
        %v2070 = vpack.c.b16 %v2061, %v2060
        %v2071 = vpack.c.b16 %v2063, %v2062
        %2080 = vmatprep.subr.bf16.mxu0 %v1889
        %2081 = vmatpush1.bf16.msra.mxu0 %v1888
        %2082 = vmatprep.subr.bf16.mxu0 %v1893
        %2083 = vmatpush1.bf16.msra.mxu0 %v1892
        %2084 = vmatprep.subr.bf16.mxu0 %v1897
        %2085 = vmatpush1.bf16.msra.mxu0 %v1896
        %2086 = vmatprep.subr.bf16.mxu0 %v1901
        %2087 = vmatpush1.bf16.msra.mxu0 %v1900
        %2088 = vmatprep.subr.bf16.mxu0 %v1905
        %2089 = vmatpush1.bf16.msra.mxu0 %v1904
        %2090 = vmatprep.subr.bf16.mxu0 %v1909
        %2091 = vmatpush1.bf16.msra.mxu0 %v1908
        %2092 = vmatprep.subr.bf16.mxu0 %v1913
        %2093 = vmatpush1.bf16.msra.mxu0 %v1912
        %2094 = vmatprep.subr.bf16.mxu0 %v1917
        %2095 = vmatpush1.bf16.msra.mxu0 %v1916
        %2096 = vmatprep.subr.bf16.mxu0 0
        %2097 = vmatpush1.bf16.msra.mxu0 0
        %2098 = vmatprep.subr.bf16.mxu0 0
        %2099 = vmatpush1.bf16.msra.mxu0 0
        %2100 = vmatprep.subr.bf16.mxu0 0
        %2101 = vmatpush1.bf16.msra.mxu0 0
        %2102 = vmatprep.subr.bf16.mxu0 0
        %2103 = vmatpush1.bf16.msra.mxu0 0
        %2104 = vmatprep.subr.bf16.mxu0 0
        %2105 = vmatpush1.bf16.msra.mxu0 0
        %2106 = vmatprep.subr.bf16.mxu0 0
        %2107 = vmatpush1.bf16.msra.mxu0 0
        %2108 = vmatprep.subr.bf16.mxu0 0
        %2109 = vmatpush1.bf16.msra.mxu0 0
        %2110 = vmatprep.subr.bf16.mxu0 0
        %2111 = vmatpush1.bf16.msra.mxu0 0
        %2112 = vmatprep.mubr.bf16.mxu0 0
        %2113 = vmatmul.mubr.bf16.gmra.mrb[0].mxu0 %v2064
        %v2114 = vpop.f32.mrb[0].mxu0
        %v2115 = vadd.f32 %v1955, %v2114
        %v2116 = vpop.f32.mrb[0].mxu0
        %v2117 = vadd.f32 %v1955, %v2116
        %v2118 = vpop.f32.mrb[0].mxu0
        %v2119 = vadd.f32 %v1960, %v2118
        %v2120 = vpop.f32.mrb[0].mxu0
        %v2121 = vadd.f32 %v1960, %v2120
        %2122 = vmatprep.mubr.bf16.mxu0 0
        %2123 = vmatmul.mubr.bf16.gmra.mrb[0].mxu0 %v2065
        %v2124 = vpop.f32.mrb[0].mxu0
        %v2125 = vadd.f32 %v1965, %v2124
        %v2126 = vpop.f32.mrb[0].mxu0
        %v2127 = vadd.f32 %v1965, %v2126
        %v2128 = vpop.f32.mrb[0].mxu0
        %v2129 = vadd.f32 %v1970, %v2128
        %v2130 = vpop.f32.mrb[0].mxu0
        %v2131 = vadd.f32 %v1970, %v2130
        %2132 = vmatprep.mubr.bf16.mxu0 0
        %2133 = vmatmul.mubr.bf16.gmra.mrb[0].mxu0 %v2066
        %v2134 = vpop.f32.mrb[0].mxu0
        %v2135 = vadd.f32 %v1975, %v2134
        %v2136 = vpop.f32.mrb[0].mxu0
        %v2137 = vadd.f32 %v1975, %v2136
        %v2138 = vpop.f32.mrb[0].mxu0
        %v2139 = vadd.f32 %v1980, %v2138
        %v2140 = vpop.f32.mrb[0].mxu0
        %v2141 = vadd.f32 %v1980, %v2140
        %2142 = vmatprep.mubr.bf16.mxu0 0
        %2143 = vmatmul.mubr.bf16.gmra.mrb[0].mxu0 %v2067
        %v2144 = vpop.f32.mrb[0].mxu0
        %v2145 = vadd.f32 %v1985, %v2144
        %v2146 = vpop.f32.mrb[0].mxu0
        %v2147 = vadd.f32 %v1985, %v2146
        %v2148 = vpop.f32.mrb[0].mxu0
        %v2149 = vadd.f32 %v1990, %v2148
        %v2150 = vpop.f32.mrb[0].mxu0
        %v2151 = vadd.f32 %v1990, %v2150
        %2152 = vmatprep.mubr.bf16.mxu0 0
        %2153 = vmatmul.mubr.bf16.gmra.mrb[0].mxu0 %v2068
        %v2154 = vpop.f32.mrb[0].mxu0
        %v2155 = vadd.f32 %v1995, %v2154
        %v2156 = vpop.f32.mrb[0].mxu0
        %v2157 = vadd.f32 %v1995, %v2156
        %v2158 = vpop.f32.mrb[0].mxu0
        %v2159 = vadd.f32 %v2000, %v2158
        %v2160 = vpop.f32.mrb[0].mxu0
        %v2161 = vadd.f32 %v2000, %v2160
        %2162 = vmatprep.mubr.bf16.mxu0 0
        %2163 = vmatmul.mubr.bf16.gmra.mrb[0].mxu0 %v2069
        %v2164 = vpop.f32.mrb[0].mxu0
        %v2165 = vadd.f32 %v2005, %v2164
        %v2166 = vpop.f32.mrb[0].mxu0
        %v2167 = vadd.f32 %v2005, %v2166
        %v2168 = vpop.f32.mrb[0].mxu0
        %v2169 = vadd.f32 %v2010, %v2168
        %v2170 = vpop.f32.mrb[0].mxu0
        %v2171 = vadd.f32 %v2010, %v2170
        %2172 = vmatprep.mubr.bf16.mxu0 0
        %2173 = vmatmul.mubr.bf16.gmra.mrb[0].mxu0 %v2070
        %v2174 = vpop.f32.mrb[0].mxu0
        %v2175 = vadd.f32 %v2015, %v2174
        %v2176 = vpop.f32.mrb[0].mxu0
        %v2177 = vadd.f32 %v2015, %v2176
        %v2178 = vpop.f32.mrb[0].mxu0
        %v2179 = vadd.f32 %v2020, %v2178
        %v2180 = vpop.f32.mrb[0].mxu0
        %v2181 = vadd.f32 %v2020, %v2180
        %2182 = vmatprep.mubr.bf16.mxu0 0
        %2183 = vmatmul.mubr.bf16.gmra.mrb[0].mxu0 %v2071
        %v2184 = vpop.f32.mrb[0].mxu0
        %v2185 = vadd.f32 %v2025, %v2184
        %v2186 = vpop.f32.mrb[0].mxu0
        %v2187 = vadd.f32 %v2025, %v2186
        %v2188 = vpop.f32.mrb[0].mxu0
        %v2189 = vadd.f32 %v2030, %v2188
        %v2190 = vpop.f32.mrb[0].mxu0
        %v2191 = vadd.f32 %v2030, %v2190
        %2192 = vdwg.mxu0
        %2193 = vmatprep.subr.bf16.mxu0 %v1891
        %2194 = vmatpush1.bf16.msra.mxu0 %v1890
        %2195 = vmatprep.subr.bf16.mxu0 %v1895
        %2196 = vmatpush1.bf16.msra.mxu0 %v1894
        %2197 = vmatprep.subr.bf16.mxu0 %v1899
        %2198 = vmatpush1.bf16.msra.mxu0 %v1898
        %2199 = vmatprep.subr.bf16.mxu0 %v1903
        %2200 = vmatpush1.bf16.msra.mxu0 %v1902
        %2201 = vmatprep.subr.bf16.mxu0 %v1907
        %2202 = vmatpush1.bf16.msra.mxu0 %v1906
        %2203 = vmatprep.subr.bf16.mxu0 %v1911
        %2204 = vmatpush1.bf16.msra.mxu0 %v1910
        %2205 = vmatprep.subr.bf16.mxu0 %v1915
        %2206 = vmatpush1.bf16.msra.mxu0 %v1914
        %2207 = vmatprep.subr.bf16.mxu0 %v1919
        %2208 = vmatpush1.bf16.msra.mxu0 %v1918
        %2209 = vmatprep.subr.bf16.mxu0 0
        %2210 = vmatpush1.bf16.msra.mxu0 0
        %2211 = vmatprep.subr.bf16.mxu0 0
        %2212 = vmatpush1.bf16.msra.mxu0 0
        %2213 = vmatprep.subr.bf16.mxu0 0
        %2214 = vmatpush1.bf16.msra.mxu0 0
        %2215 = vmatprep.subr.bf16.mxu0 0
        %2216 = vmatpush1.bf16.msra.mxu0 0
        %2217 = vmatprep.subr.bf16.mxu0 0
        %2218 = vmatpush1.bf16.msra.mxu0 0
        %2219 = vmatprep.subr.bf16.mxu0 0
        %2220 = vmatpush1.bf16.msra.mxu0 0
        %2221 = vmatprep.subr.bf16.mxu0 0
        %2222 = vmatpush1.bf16.msra.mxu0 0
        %2223 = vmatprep.subr.bf16.mxu0 0
        %2224 = vmatpush1.bf16.msra.mxu0 0
        %2225 = vmatprep.mubr.bf16.mxu0 0
        %2226 = vmatmul.mubr.bf16.gmra.mrb[0].mxu0 %v2064
        %v2227 = vpop.f32.mrb[0].mxu0
        %v2228 = vadd.f32 %v1955, %v2227
        %v2229 = vpop.f32.mrb[0].mxu0
        %v2230 = vadd.f32 %v1955, %v2229
        %v2231 = vpop.f32.mrb[0].mxu0
        %v2232 = vadd.f32 %v1960, %v2231
        %v2233 = vpop.f32.mrb[0].mxu0
        %v2234 = vadd.f32 %v1960, %v2233
        %2235 = vmatprep.mubr.bf16.mxu0 0
        %2236 = vmatmul.mubr.bf16.gmra.mrb[0].mxu0 %v2065
        %v2237 = vpop.f32.mrb[0].mxu0
        %v2238 = vadd.f32 %v1965, %v2237
        %v2239 = vpop.f32.mrb[0].mxu0
        %v2240 = vadd.f32 %v1965, %v2239
        %v2241 = vpop.f32.mrb[0].mxu0
        %v2242 = vadd.f32 %v1970, %v2241
        %v2243 = vpop.f32.mrb[0].mxu0
        %v2244 = vadd.f32 %v1970, %v2243
        %2245 = vmatprep.mubr.bf16.mxu0 0
        %2246 = vmatmul.mubr.bf16.gmra.mrb[0].mxu0 %v2066
        %v2247 = vpop.f32.mrb[0].mxu0
        %v2248 = vadd.f32 %v1975, %v2247
        %v2249 = vpop.f32.mrb[0].mxu0
        %v2250 = vadd.f32 %v1975, %v2249
        %v2251 = vpop.f32.mrb[0].mxu0
        %v2252 = vadd.f32 %v1980, %v2251
        %v2253 = vpop.f32.mrb[0].mxu0
        %v2254 = vadd.f32 %v1980, %v2253
        %2255 = vmatprep.mubr.bf16.mxu0 0
        %2256 = vmatmul.mubr.bf16.gmra.mrb[0].mxu0 %v2067
        %v2257 = vpop.f32.mrb[0].mxu0
        %v2258 = vadd.f32 %v1985, %v2257
        %v2259 = vpop.f32.mrb[0].mxu0
        %v2260 = vadd.f32 %v1985, %v2259
        %v2261 = vpop.f32.mrb[0].mxu0
        %v2262 = vadd.f32 %v1990, %v2261
        %v2263 = vpop.f32.mrb[0].mxu0
        %v2264 = vadd.f32 %v1990, %v2263
        %2265 = vmatprep.mubr.bf16.mxu0 0
        %2266 = vmatmul.mubr.bf16.gmra.mrb[0].mxu0 %v2068
        %v2267 = vpop.f32.mrb[0].mxu0
        %v2268 = vadd.f32 %v1995, %v2267
        %v2269 = vpop.f32.mrb[0].mxu0
        %v2270 = vadd.f32 %v1995, %v2269
        %v2271 = vpop.f32.mrb[0].mxu0
        %v2272 = vadd.f32 %v2000, %v2271
        %v2273 = vpop.f32.mrb[0].mxu0
        %v2274 = vadd.f32 %v2000, %v2273
        %2275 = vmatprep.mubr.bf16.mxu0 0
        %2276 = vmatmul.mubr.bf16.gmra.mrb[0].mxu0 %v2069
        %v2277 = vpop.f32.mrb[0].mxu0
        %v2278 = vadd.f32 %v2005, %v2277
        %v2279 = vpop.f32.mrb[0].mxu0
        %v2280 = vadd.f32 %v2005, %v2279
        %v2281 = vpop.f32.mrb[0].mxu0
        %v2282 = vadd.f32 %v2010, %v2281
        %v2283 = vpop.f32.mrb[0].mxu0
        %v2284 = vadd.f32 %v2010, %v2283
        %2285 = vmatprep.mubr.bf16.mxu0 0
        %2286 = vmatmul.mubr.bf16.gmra.mrb[0].mxu0 %v2070
        %v2287 = vpop.f32.mrb[0].mxu0
        %v2288 = vadd.f32 %v2015, %v2287
        %v2289 = vpop.f32.mrb[0].mxu0
        %v2290 = vadd.f32 %v2015, %v2289
        %v2291 = vpop.f32.mrb[0].mxu0
        %v2292 = vadd.f32 %v2020, %v2291
        %v2293 = vpop.f32.mrb[0].mxu0
        %v2294 = vadd.f32 %v2020, %v2293
        %2295 = vmatprep.mubr.bf16.mxu0 0
        %2296 = vmatmul.mubr.bf16.gmra.mrb[0].mxu0 %v2071
        %v2297 = vpop.f32.mrb[0].mxu0
        %v2298 = vadd.f32 %v2025, %v2297
        %v2299 = vpop.f32.mrb[0].mxu0
        %v2300 = vadd.f32 %v2025, %v2299
        %v2301 = vpop.f32.mrb[0].mxu0
        %v2302 = vadd.f32 %v2030, %v2301
        %v2303 = vpop.f32.mrb[0].mxu0
        %v2304 = vadd.f32 %v2030, %v2303
        %2305 = vdwg.mxu0
        %v2306 = vpack.c.bf16 %v2119, %v2115
        %v2307 = vpack.c.bf16 %v2121, %v2117
        %v2308 = vpack.c.bf16 %v2232, %v2228
        %v2309 = vpack.c.bf16 %v2234, %v2230
        %v2310 = vpack.c.bf16 %v2129, %v2125
        %v2311 = vpack.c.bf16 %v2131, %v2127
        %v2312 = vpack.c.bf16 %v2242, %v2238
        %v2313 = vpack.c.bf16 %v2244, %v2240
        %v2314 = vpack.c.bf16 %v2139, %v2135
        %v2315 = vpack.c.bf16 %v2141, %v2137
        %v2316 = vpack.c.bf16 %v2252, %v2248
        %v2317 = vpack.c.bf16 %v2254, %v2250
        %v2318 = vpack.c.bf16 %v2149, %v2145
        %v2319 = vpack.c.bf16 %v2151, %v2147
        %v2320 = vpack.c.bf16 %v2262, %v2258
        %v2321 = vpack.c.bf16 %v2264, %v2260
        %v2322 = vpack.c.bf16 %v2159, %v2155
        %v2323 = vpack.c.bf16 %v2161, %v2157
        %v2324 = vpack.c.bf16 %v2272, %v2268
        %v2325 = vpack.c.bf16 %v2274, %v2270
        %v2326 = vpack.c.bf16 %v2169, %v2165
        %v2327 = vpack.c.bf16 %v2171, %v2167
        %v2328 = vpack.c.bf16 %v2282, %v2278
        %v2329 = vpack.c.bf16 %v2284, %v2280
        %v2330 = vpack.c.bf16 %v2179, %v2175
        %v2331 = vpack.c.bf16 %v2181, %v2177
        %v2332 = vpack.c.bf16 %v2292, %v2288
        %v2333 = vpack.c.bf16 %v2294, %v2290
        %v2334 = vpack.c.bf16 %v2189, %v2185
        %v2335 = vpack.c.bf16 %v2191, %v2187
        %v2336 = vpack.c.bf16 %v2302, %v2298
        %v2337 = vpack.c.bf16 %v2304, %v2300
        %v2370 = vunpack.c.l.b16 %v2306
        %v2371 = vunpack.c.l.b16 %v2307
        %v2372 = vunpack.c.l.b16 %v2308
        %v2373 = vunpack.c.l.b16 %v2309
        %v2374 = vunpack.c.h.b16 %v2306
        %v2375 = vunpack.c.h.b16 %v2307
        %v2376 = vunpack.c.h.b16 %v2308
        %v2377 = vunpack.c.h.b16 %v2309
        %v2378 = vunpack.c.l.b16 %v2310
        %v2379 = vunpack.c.l.b16 %v2311
        %v2380 = vunpack.c.l.b16 %v2312
        %v2381 = vunpack.c.l.b16 %v2313
        %v2382 = vunpack.c.h.b16 %v2310
        %v2383 = vunpack.c.h.b16 %v2311
        %v2384 = vunpack.c.h.b16 %v2312
        %v2385 = vunpack.c.h.b16 %v2313
        %v2386 = vunpack.c.l.b16 %v2314
        %v2387 = vunpack.c.l.b16 %v2315
        %v2388 = vunpack.c.l.b16 %v2316
        %v2389 = vunpack.c.l.b16 %v2317
        %v2390 = vunpack.c.h.b16 %v2314
        %v2391 = vunpack.c.h.b16 %v2315
        %v2392 = vunpack.c.h.b16 %v2316
        %v2393 = vunpack.c.h.b16 %v2317
        %v2394 = vunpack.c.l.b16 %v2318
        %v2395 = vunpack.c.l.b16 %v2319
        %v2396 = vunpack.c.l.b16 %v2320
        %v2397 = vunpack.c.l.b16 %v2321
        %v2398 = vunpack.c.h.b16 %v2318
        %v2399 = vunpack.c.h.b16 %v2319
        %v2400 = vunpack.c.h.b16 %v2320
        %v2401 = vunpack.c.h.b16 %v2321
        %v2402 = vunpack.c.l.b16 %v2322
        %v2403 = vunpack.c.l.b16 %v2323
        %v2404 = vunpack.c.l.b16 %v2324
        %v2405 = vunpack.c.l.b16 %v2325
        %v2406 = vunpack.c.h.b16 %v2322
        %v2407 = vunpack.c.h.b16 %v2323
        %v2408 = vunpack.c.h.b16 %v2324
        %v2409 = vunpack.c.h.b16 %v2325
        %v2410 = vunpack.c.l.b16 %v2326
        %v2411 = vunpack.c.l.b16 %v2327
        %v2412 = vunpack.c.l.b16 %v2328
        %v2413 = vunpack.c.l.b16 %v2329
        %v2414 = vunpack.c.h.b16 %v2326
        %v2415 = vunpack.c.h.b16 %v2327
        %v2416 = vunpack.c.h.b16 %v2328
        %v2417 = vunpack.c.h.b16 %v2329
        %v2418 = vunpack.c.l.b16 %v2330
        %v2419 = vunpack.c.l.b16 %v2331
        %v2420 = vunpack.c.l.b16 %v2332
        %v2421 = vunpack.c.l.b16 %v2333
        %v2422 = vunpack.c.h.b16 %v2330
        %v2423 = vunpack.c.h.b16 %v2331
        %v2424 = vunpack.c.h.b16 %v2332
        %v2425 = vunpack.c.h.b16 %v2333
        %v2426 = vunpack.c.l.b16 %v2334
        %v2427 = vunpack.c.l.b16 %v2335
        %v2428 = vunpack.c.l.b16 %v2336
        %v2429 = vunpack.c.l.b16 %v2337
        %v2430 = vunpack.c.h.b16 %v2334
        %v2431 = vunpack.c.h.b16 %v2335
        %v2432 = vunpack.c.h.b16 %v2336
        %v2433 = vunpack.c.h.b16 %v2337
        %v2434 = vpack.c.b16 %v2371, %v2370
        %v2435 = vpack.c.b16 %v2373, %v2372
        %v2436 = vpack.c.b16 %v2375, %v2374
        %v2437 = vpack.c.b16 %v2377, %v2376
        %v2438 = vpack.c.b16 %v2379, %v2378
        %v2439 = vpack.c.b16 %v2381, %v2380
        %v2440 = vpack.c.b16 %v2383, %v2382
        %v2441 = vpack.c.b16 %v2385, %v2384
        %v2442 = vpack.c.b16 %v2387, %v2386
        %v2443 = vpack.c.b16 %v2389, %v2388
        %v2444 = vpack.c.b16 %v2391, %v2390
        %v2445 = vpack.c.b16 %v2393, %v2392
        %v2446 = vpack.c.b16 %v2395, %v2394
        %v2447 = vpack.c.b16 %v2397, %v2396
        %v2448 = vpack.c.b16 %v2399, %v2398
        %v2449 = vpack.c.b16 %v2401, %v2400
        %v2450 = vpack.c.b16 %v2403, %v2402
        %v2451 = vpack.c.b16 %v2405, %v2404
        %v2452 = vpack.c.b16 %v2407, %v2406
        %v2453 = vpack.c.b16 %v2409, %v2408
        %v2454 = vpack.c.b16 %v2411, %v2410
        %v2455 = vpack.c.b16 %v2413, %v2412
        %v2456 = vpack.c.b16 %v2415, %v2414
        %v2457 = vpack.c.b16 %v2417, %v2416
        %v2458 = vpack.c.b16 %v2419, %v2418
        %v2459 = vpack.c.b16 %v2421, %v2420
        %v2460 = vpack.c.b16 %v2423, %v2422
        %v2461 = vpack.c.b16 %v2425, %v2424
        %v2462 = vpack.c.b16 %v2427, %v2426
        %v2463 = vpack.c.b16 %v2429, %v2428
        %v2464 = vpack.c.b16 %v2431, %v2430
        %v2465 = vpack.c.b16 %v2433, %v2432
        %2498 = vst [vmem:[%s406] sm:$0xff] %v2434
        %2499 = vst [vmem:[%s406 + $0x8] sm:$0xff] %v2435
        %2500 = vst [vmem:[%s406 + $0x10] sm:$0xff] %v2436
        %2501 = vst [vmem:[%s406 + $0x18] sm:$0xff] %v2437
        %2502 = vst [vmem:[%s406 + $0x20] sm:$0xff] %v2438
        %2503 = vst [vmem:[%s406 + $0x28] sm:$0xff] %v2439
        %2504 = vst [vmem:[%s406 + $0x30] sm:$0xff] %v2440
        %2505 = vst [vmem:[%s406 + $0x38] sm:$0xff] %v2441
        %2506 = vst [vmem:[%s406 + $0x40] sm:$0xff] %v2442
        %2507 = vst [vmem:[%s406 + $0x48] sm:$0xff] %v2443
        %2508 = vst [vmem:[%s406 + $0x50] sm:$0xff] %v2444
        %2509 = vst [vmem:[%s406 + $0x58] sm:$0xff] %v2445
        %2510 = vst [vmem:[%s406 + $0x60] sm:$0xff] %v2446
        %2511 = vst [vmem:[%s406 + $0x68] sm:$0xff] %v2447
        %2512 = vst [vmem:[%s406 + $0x70] sm:$0xff] %v2448
        %2513 = vst [vmem:[%s406 + $0x78] sm:$0xff] %v2449
        %2514 = vst [vmem:[%s406 + $0x80] sm:$0xff] %v2450
        %2515 = vst [vmem:[%s406 + $0x88] sm:$0xff] %v2451
        %2516 = vst [vmem:[%s406 + $0x90] sm:$0xff] %v2452
        %2517 = vst [vmem:[%s406 + $0x98] sm:$0xff] %v2453
        %2518 = vst [vmem:[%s406 + $0xa0] sm:$0xff] %v2454
        %2519 = vst [vmem:[%s406 + $0xa8] sm:$0xff] %v2455
        %2520 = vst [vmem:[%s406 + $0xb0] sm:$0xff] %v2456
        %2521 = vst [vmem:[%s406 + $0xb8] sm:$0xff] %v2457
        %2522 = vst [vmem:[%s406 + $0xc0] sm:$0xff] %v2458
        %2523 = vst [vmem:[%s406 + $0xc8] sm:$0xff] %v2459
        %2524 = vst [vmem:[%s406 + $0xd0] sm:$0xff] %v2460
        %2525 = vst [vmem:[%s406 + $0xd8] sm:$0xff] %v2461
        %2526 = vst [vmem:[%s406 + $0xe0] sm:$0xff] %v2462
        %2527 = vst [vmem:[%s406 + $0xe8] sm:$0xff] %v2463
        %2528 = vst [vmem:[%s406 + $0xf0] sm:$0xff] %v2464
        %2529 = vst [vmem:[%s406 + $0xf8] sm:$0xff] %v2465
        %s2530 = sand.u32 %s241, 1
        %s2531 = scalar_lea.sflag [#allocation4], %s2530
        %s2532 = sand.u32 %s241, 1
        %s2533 = smul.addr %s2532, 256
        %s2534 = scalar_lea.vmem [#allocation3], %s2533
        // Predicated region
        $region80: #{tpu_custom_call.1} parent=74 // pred_check
          %p2535 = pneg %p251
        $region81: #{tpu_custom_call.1} parent=74 // pred_check_branch
          %2537 = sbr.rel (%p2535) target = $region83
        $region82: #{tpu_custom_call.1} parent=74 // pred_region
          %s2538 = smul.u32 4, %s28
          %s2540 = ssub.s32 4096, 4096
          %2541 = vsyncadd %s2531, %s2540
          %s2542 = smul.addr %s27, 128
          %s2543 = sadd.s32 %s2538, %s2542
          %s2544 = smul.addr %s2543, 64
          %s2545 = scalar_lea.hbm %s9, %s2544
          %s2546 = sshll.u32 %s2534, 4
          %s2547 = int_to_ptr.vmem [resolvable:$true] %s2546
          %2552 = dma.vmem_to_hbm [thread:$0]  %s2547, 4096, %s2545, %s2531, 256, 512, 16
        $region83: #{tpu_custom_call.1} parent=74 // pred_fallthru
          _
      $region75: #{tpu_custom_call.1} parent=5 // pred_fallthru
        _
      %p2553 = scmp.le.s32.totalorder 2, %s18
      // Predicated region
      $region84: #{tpu_custom_call.1} parent=5 // pred_check
        %p2554 = pneg %p2553
      $region85: #{tpu_custom_call.1} parent=5 // pred_check_branch
        %2556 = sbr.rel (%p2554) target = $region87
      $region86: #{tpu_custom_call.1} parent=5 // pred_region
        %s2557 = ssub.s32 %s18, 2
        // Predicated region
        $region88: #{tpu_custom_call.1} parent=86 // pred_check
          %p2558 = pneg %p257
        $region89: #{tpu_custom_call.1} parent=86 // pred_check_branch
          %2560 = sbr.rel (%p2558) target = $region91
        $region90: #{tpu_custom_call.1} parent=86 // pred_region
          %s2561 = sand.u32 %s242, 1
          %s2562 = scalar_lea.sflag [#allocation4], %s2561
          %s2563 = sand.u32 %s242, 1
          %s2564 = smul.addr %s2563, 256
          %s2565 = scalar_lea.vmem [#allocation3], %s2564
          %2566 = dma.done %s2562, 4096
        $region91: #{tpu_custom_call.1} parent=86 // pred_fallthru
          _
      $region87: #{tpu_custom_call.1} parent=5 // pred_fallthru
        _
    $region6: #{tpu_custom_call.1} parent=1 // loop_footer
      %s22 = sadd.s32 1, %s18
    $region7: #{tpu_custom_call.1} parent=1 // loop_footer_branch
      %17 = sbr.rel target = $region3
    $region8: #{tpu_custom_call.1} parent=1 // loop_exit
      _
    %2567 = vsyncpa [#allocation4], 1
    %s2568 = scalar_lea.sflag [#allocation4], 1
    %2569 = vsyncpa %s2568, 1

</llo_original>
